<compile_context>
chip_gen: v6e
topology: v6e:2x2x1
jax: 0.10.0
libtpu: 0.0.40
codegen_flags: <defaults>
</compile_context>

<pallas_src>
import functools

import jax
import jax.numpy as jnp
from jax import lax
from jax.experimental import pallas as pl
from jax.experimental.pallas import tpu as pltpu


def head_kernel(x_ref, w1_ref, b1_ref, w2_ref, b2_ref, mask_ref, out_ref, *,
                width, hw, imgs):
    """Fused head forward for `imgs` images per grid step.

    x_ref    : (imgs, C, HW)    inputs (flattened CHW, lane-dense)
    w1_ref   : (C, C)           1x1 conv weight [out, in], BN1 scale folded in
    b1_ref   : (C, 1)           folded BN1 bias
    w2_ref   : (9, C, C)        3x3 conv taps [kh*3+kw, out, in], BN2 folded in
    b2_ref   : (C, 1)           folded BN2 bias
    mask_ref : (9, imgs*HW)     per-tap validity masks (borders + image seams)
    out_ref  : (imgs, C, HW)    outputs
    """
    N = imgs * hw

    # Lane-concat the images into one wide (C, imgs*HW) slab.  HW is a multiple
    # of 128, so every piece is lane-aligned; one wide matmul per stage
    # amortizes MXU weight pushes and per-step overhead on single-TC chips.
    if imgs == 1:
        x = x_ref[0]
    else:
        x = jnp.concatenate([x_ref[b] for b in range(imgs)], axis=-1)

    # ---- stage 1: 1x1 conv (BN1 scale pre-folded) + bias + ReLU ----
    y1 = jnp.dot(w1_ref[...], x, preferred_element_type=jnp.float32)
    y1 = jnp.maximum(y1 + b1_ref[...], 0.0)

    # ---- stage 2: 3x3 conv as 9 accumulating tap matmuls ----
    # shifted[c, p] = y1[c, p + dy*W + dx]  (XLU roll, free slot), masked so
    # that wrapped-around lanes / image seams / spatial borders contribute 0.
    acc = jnp.dot(w2_ref[4], y1, preferred_element_type=jnp.float32)  # center tap
    tap = 0
    for dy in (-1, 0, 1):
        for dx in (-1, 0, 1):
            if dy == 0 and dx == 0:
                tap += 1
                continue
            amt = (-(dy * width + dx)) % N              # static, non-negative
            shifted = pltpu.roll(y1, amt, axis=1)
            shifted = shifted * mask_ref[pl.ds(tap, 1), :]
            acc = acc + jnp.dot(w2_ref[tap], shifted,
                                preferred_element_type=jnp.float32)
            tap += 1

    y2 = jnp.maximum(acc + b2_ref[...], 0.0)

    # Split back into per-image lane-aligned slabs (offsets are multiples of HW).
    for b in range(imgs):
        out_ref[b] = y2[:, b * hw:(b + 1) * hw]


def _tap_masks(H, W, imgs):
    """(9, imgs*H*W) float32 validity masks, tap order = kh-major, kw-minor."""
    hw = H * W
    h = jnp.arange(hw, dtype=jnp.int32) // W
    w = jnp.arange(hw, dtype=jnp.int32) % W
    rows = []
    for dy in (-1, 0, 1):
        for dx in (-1, 0, 1):
            m = jnp.ones((hw,), jnp.float32)
            if dy == -1:
                m = m * (h != 0).astype(jnp.float32)
            elif dy == 1:
                m = m * (h != H - 1).astype(jnp.float32)
            if dx == -1:
                m = m * (w != 0).astype(jnp.float32)
            elif dx == 1:
                m = m * (w != W - 1).astype(jnp.float32)
            rows.append(m)
    masks = jnp.stack(rows, axis=0)            # (9, HW)
    return jnp.tile(masks, (1, imgs))          # (9, imgs*HW)


def _imgs_per_step(batch):
    """v7x: 1 image/step so the parallel batch axis feeds both TensorCores.
    v5e/v6e (single TC): merge the whole batch into one wide step."""
    try:
        kind = jax.devices()[0].device_kind.lower()
    except Exception:
        kind = ""
    if "v7" in kind or "7x" in kind:
        return 1
    return batch


@jax.jit
def head_forward(x_nchw, w1f, b1, w2f, b2):
    """x_nchw: (B, C, H, W) float32 in PyTorch layout; returns same layout."""
    B, C, H, W = x_nchw.shape
    hw = H * W
    ips = _imgs_per_step(B)
    if B % ips:
        ips = 1
    grid = B // ips

    x = x_nchw.reshape(B, C, hw).astype(jnp.float32)   # free reshape, stays NCHW
    masks = _tap_masks(H, W, ips)

    kernel = functools.partial(head_kernel, width=W, hw=hw, imgs=ips)

    flops = 2 * 10 * C * C * hw * B                    # 1x1 (1 tap) + 3x3 (9 taps)
    bytes_accessed = 4 * (2 * B * C * hw + 10 * C * C + 2 * C + 9 * ips * hw)

    out = pl.pallas_call(
        kernel,
        out_shape=jax.ShapeDtypeStruct((B, C, hw), jnp.float32),
        grid_spec=pltpu.PrefetchScalarGridSpec(
            num_scalar_prefetch=0,
            grid=(grid,),
            in_specs=[
                pl.BlockSpec((ips, C, hw), lambda g: (g, 0, 0)),
                pl.BlockSpec((C, C), lambda g: (0, 0)),
                pl.BlockSpec((C, 1), lambda g: (0, 0)),
                pl.BlockSpec((9, C, C), lambda g: (0, 0, 0)),
                pl.BlockSpec((C, 1), lambda g: (0, 0)),
                pl.BlockSpec((9, ips * hw), lambda g: (0, 0)),
            ],
            out_specs=pl.BlockSpec((ips, C, hw), lambda g: (g, 0, 0)),
        ),
        compiler_params=pltpu.CompilerParams(
            dimension_semantics=("parallel",)),
        cost_estimate=pl.CostEstimate(
            flops=flops, transcendentals=0, bytes_accessed=bytes_accessed),
    )(x, w1f, b1, w2f, b2, masks)

    return out.reshape(B, C, H, W)


# ----------------------------- parameters & reference -----------------------------

def make_raw_params(key, dim):
    """Synthetic conv weights + BatchNorm statistics (inference mode)."""
    ks = jax.random.split(key, 10)
    w1 = 0.1 * jax.random.normal(ks[0], (dim, dim, 1, 1), jnp.float32)   # OIHW
    w2 = 0.1 * jax.random.normal(ks[1], (dim, dim, 3, 3), jnp.float32)   # OIHW
    g1 = 1.0 + 0.1 * jax.random.normal(ks[2], (dim,), jnp.float32)
    be1 = 0.1 * jax.random.normal(ks[3], (dim,), jnp.float32)
    m1 = 0.1 * jax.random.normal(ks[4], (dim,), jnp.float32)
    v1 = jnp.abs(jax.random.normal(ks[5], (dim,), jnp.float32)) + 0.5
    g2 = 1.0 + 0.1 * jax.random.normal(ks[6], (dim,), jnp.float32)
    be2 = 0.1 * jax.random.normal(ks[7], (dim,), jnp.float32)
    m2 = 0.1 * jax.random.normal(ks[8], (dim,), jnp.float32)
    v2 = jnp.abs(jax.random.normal(ks[9], (dim,), jnp.float32)) + 0.5
    return w1, g1, be1, m1, v1, w2, g2, be2, m2, v2


def fold_params(raw, eps=1e-5):
    """Fold BN (inference) into conv weights; split the 3x3 weight into 9 taps."""
    w1, g1, be1, m1, v1, w2, g2, be2, m2, v2 = raw
    dim = w1.shape[0]
    s1 = g1 / jnp.sqrt(v1 + eps)
    s2 = g2 / jnp.sqrt(v2 + eps)
    w1f = w1[:, :, 0, 0] * s1[:, None]                        # (C, C) [out, in]
    b1 = (be1 - m1 * s1).reshape(dim, 1)
    w2f4 = w2 * s2[:, None, None, None]                       # (C, C, 3, 3)
    w2f = jnp.stack([w2f4[:, :, kh, kw]                       # (9, C, C), kh-major
                     for kh in range(3) for kw in range(3)], axis=0)
    b2 = (be2 - m2 * s2).reshape(dim, 1)
    return w1f, b1, w2f, b2


def ref_forward(x, raw, eps=1e-5):
    """Pure-JAX reference with un-folded BN, for correctness checking."""
    w1, g1, be1, m1, v1, w2, g2, be2, m2, v2 = raw

    def bn(y, g, b, m, v):
        s = (g / jnp.sqrt(v + eps))[None, :, None, None]
        return (y - m[None, :, None, None]) * s + b[None, :, None, None]

    y = lax.conv_general_dilated(
        x, w1, (1, 1), 'SAME', dimension_numbers=('NCHW', 'OIHW', 'NCHW'),
        precision=lax.Precision.HIGHEST)
    y = jnp.maximum(bn(y, g1, be1, m1, v1), 0.0)
    y = lax.conv_general_dilated(
        y, w2, (1, 1), 'SAME', dimension_numbers=('NCHW', 'OIHW', 'NCHW'),
        precision=lax.Precision.HIGHEST)
    return jnp.maximum(bn(y, g2, be2, m2, v2), 0.0)


if __name__ == "__main__":
    key = jax.random.PRNGKey(0)
    B, C, H, W = 2, 32, 16, 16                    # dim = 32
    kx, kp = jax.random.split(key)
    x = jax.random.normal(kx, (B, C, H, W), jnp.float32)   # NCHW input (PyTorch layout)

    raw = make_raw_params(kp, C)
    folded = fold_params(raw)

    out = jax.block_until_ready(head_forward(x, *folded))
    ref = jax.block_until_ready(ref_forward(x, raw))

    assert out.shape == (B, C, H, W)
    max_err = float(jnp.max(jnp.abs(out - ref)))
    assert jnp.allclose(out, ref, atol=5e-4, rtol=5e-4), max_err

    # TODO(synk): BatchNorm training-mode (batch-statistics) behavior is not implemented;
    # the kernel evaluates the module in inference mode with BN folded into the convs.
    print("KERNEL_OK")
</pallas_src>

<mosaic_0001>
module attributes {stable_mosaic.version = 11 : i64} {
  func.func @head_kernel(%arg0: i32, %arg1: memref<2x32x256xf32, #tpu.memory_space<vmem>>, %arg2: memref<32x32xf32, #tpu.memory_space<vmem>>, %arg3: memref<32x1xf32, #tpu.memory_space<vmem>>, %arg4: memref<9x32x32xf32, #tpu.memory_space<vmem>>, %arg5: memref<32x1xf32, #tpu.memory_space<vmem>>, %arg6: memref<9x512xf32, #tpu.memory_space<vmem>>, %arg7: memref<2x32x256xf32, #tpu.memory_space<vmem>>) attributes {dimension_semantics = [#tpu.dimension_semantics<parallel>], iteration_bounds = array<i64: 1>, scalar_prefetch = 0 : i64, scratch_operands = 0 : i64, tpu.core_type = #tpu.core_type<tc>, window_params = [{transform_indices = @transform_0, window_bounds = array<i64: 2, 32, 256>}, {pipeline_mode = #tpu.pipeline_mode<synchronous>, transform_indices = @transform_1, window_bounds = array<i64: 32, 32>}, {pipeline_mode = #tpu.pipeline_mode<synchronous>, transform_indices = @transform_2, window_bounds = array<i64: 32, 1>}, {pipeline_mode = #tpu.pipeline_mode<synchronous>, transform_indices = @transform_3, window_bounds = array<i64: 9, 32, 32>}, {pipeline_mode = #tpu.pipeline_mode<synchronous>, transform_indices = @transform_4, window_bounds = array<i64: 32, 1>}, {pipeline_mode = #tpu.pipeline_mode<synchronous>, transform_indices = @transform_5, window_bounds = array<i64: 9, 512>}, {transform_indices = @transform_6, window_bounds = array<i64: 2, 32, 256>}]} {
    %c0 = arith.constant 0 : index
    %c0_0 = arith.constant 0 : index
    %c0_1 = arith.constant 0 : index
    %0 = vector.load %arg1[%c0, %c0_0, %c0_1] : memref<2x32x256xf32, #tpu.memory_space<vmem>>, vector<1x32x256xf32>
    %1 = vector.shape_cast %0 : vector<1x32x256xf32> to vector<32x256xf32>
    %c1 = arith.constant 1 : index
    %c0_2 = arith.constant 0 : index
    %c0_3 = arith.constant 0 : index
    %2 = vector.load %arg1[%c1, %c0_2, %c0_3] : memref<2x32x256xf32, #tpu.memory_space<vmem>>, vector<1x32x256xf32>
    %3 = vector.shape_cast %2 : vector<1x32x256xf32> to vector<32x256xf32>
    %4 = tpu.concatenate %1, %3 in 1 : vector<32x256xf32>, vector<32x256xf32> -> vector<32x512xf32>
    %c0_4 = arith.constant 0 : index
    %c0_5 = arith.constant 0 : index
    %5 = vector.load %arg2[%c0_4, %c0_5] : memref<32x32xf32, #tpu.memory_space<vmem>>, vector<32x32xf32>
    %cst = arith.constant dense<0.000000e+00> : vector<32x512xf32>
    %6 = tpu.matmul %5, %4, %cst {dimension_numbers = #tpu.dot_dimension_numbers<[1], [0], [0], [1], [0, 0, 1, 1], [], []>} : vector<32x32xf32>, vector<32x512xf32>, vector<32x512xf32> -> vector<32x512xf32>
    %c0_6 = arith.constant 0 : index
    %c0_7 = arith.constant 0 : index
    %7 = vector.load %arg3[%c0_6, %c0_7] : memref<32x1xf32, #tpu.memory_space<vmem>>, vector<32x1xf32>
    %8 = vector.broadcast %7 : vector<32x1xf32> to vector<32x512xf32>
    %9 = arith.addf %6, %8 : vector<32x512xf32>
    %cst_8 = arith.constant 0.000000e+00 : f32
    %10 = vector.broadcast %cst_8 : f32 to vector<32x512xf32>
    %11 = arith.maximumf %9, %10 : vector<32x512xf32>
    %c4 = arith.constant 4 : index
    %c0_9 = arith.constant 0 : index
    %c0_10 = arith.constant 0 : index
    %12 = vector.load %arg4[%c4, %c0_9, %c0_10] : memref<9x32x32xf32, #tpu.memory_space<vmem>>, vector<1x32x32xf32>
    %13 = vector.shape_cast %12 : vector<1x32x32xf32> to vector<32x32xf32>
    %cst_11 = arith.constant dense<0.000000e+00> : vector<32x512xf32>
    %14 = tpu.matmul %13, %11, %cst_11 {dimension_numbers = #tpu.dot_dimension_numbers<[1], [0], [0], [1], [0, 0, 1, 1], [], []>} : vector<32x32xf32>, vector<32x512xf32>, vector<32x512xf32> -> vector<32x512xf32>
    %c17_i32 = arith.constant 17 : i32
    %15 = tpu.dynamic_rotate %11 by %c17_i32 dim 1 : vector<32x512xf32>, i32 -> vector<32x512xf32>
    %c0_12 = arith.constant 0 : index
    %c0_13 = arith.constant 0 : index
    %16 = vector.load %arg6[%c0_12, %c0_13] : memref<9x512xf32, #tpu.memory_space<vmem>>, vector<1x512xf32>
    %17 = vector.broadcast %16 : vector<1x512xf32> to vector<32x512xf32>
    %18 = arith.mulf %15, %17 : vector<32x512xf32>
    %c0_14 = arith.constant 0 : index
    %c0_15 = arith.constant 0 : index
    %c0_16 = arith.constant 0 : index
    %19 = vector.load %arg4[%c0_14, %c0_15, %c0_16] : memref<9x32x32xf32, #tpu.memory_space<vmem>>, vector<1x32x32xf32>
    %20 = vector.shape_cast %19 : vector<1x32x32xf32> to vector<32x32xf32>
    %cst_17 = arith.constant dense<0.000000e+00> : vector<32x512xf32>
    %21 = tpu.matmul %20, %18, %cst_17 {dimension_numbers = #tpu.dot_dimension_numbers<[1], [0], [0], [1], [0, 0, 1, 1], [], []>} : vector<32x32xf32>, vector<32x512xf32>, vector<32x512xf32> -> vector<32x512xf32>
    %22 = arith.addf %14, %21 : vector<32x512xf32>
    %c16_i32 = arith.constant 16 : i32
    %23 = tpu.dynamic_rotate %11 by %c16_i32 dim 1 : vector<32x512xf32>, i32 -> vector<32x512xf32>
    %c1_18 = arith.constant 1 : index
    %c0_19 = arith.constant 0 : index
    %24 = vector.load %arg6[%c1_18, %c0_19] : memref<9x512xf32, #tpu.memory_space<vmem>>, vector<1x512xf32>
    %25 = vector.broadcast %24 : vector<1x512xf32> to vector<32x512xf32>
    %26 = arith.mulf %23, %25 : vector<32x512xf32>
    %c1_20 = arith.constant 1 : index
    %c0_21 = arith.constant 0 : index
    %c0_22 = arith.constant 0 : index
    %27 = vector.load %arg4[%c1_20, %c0_21, %c0_22] : memref<9x32x32xf32, #tpu.memory_space<vmem>>, vector<1x32x32xf32>
    %28 = vector.shape_cast %27 : vector<1x32x32xf32> to vector<32x32xf32>
    %cst_23 = arith.constant dense<0.000000e+00> : vector<32x512xf32>
    %29 = tpu.matmul %28, %26, %cst_23 {dimension_numbers = #tpu.dot_dimension_numbers<[1], [0], [0], [1], [0, 0, 1, 1], [], []>} : vector<32x32xf32>, vector<32x512xf32>, vector<32x512xf32> -> vector<32x512xf32>
    %30 = arith.addf %22, %29 : vector<32x512xf32>
    %c15_i32 = arith.constant 15 : i32
    %31 = tpu.dynamic_rotate %11 by %c15_i32 dim 1 : vector<32x512xf32>, i32 -> vector<32x512xf32>
    %c2 = arith.constant 2 : index
    %c0_24 = arith.constant 0 : index
    %32 = vector.load %arg6[%c2, %c0_24] : memref<9x512xf32, #tpu.memory_space<vmem>>, vector<1x512xf32>
    %33 = vector.broadcast %32 : vector<1x512xf32> to vector<32x512xf32>
    %34 = arith.mulf %31, %33 : vector<32x512xf32>
    %c2_25 = arith.constant 2 : index
    %c0_26 = arith.constant 0 : index
    %c0_27 = arith.constant 0 : index
    %35 = vector.load %arg4[%c2_25, %c0_26, %c0_27] : memref<9x32x32xf32, #tpu.memory_space<vmem>>, vector<1x32x32xf32>
    %36 = vector.shape_cast %35 : vector<1x32x32xf32> to vector<32x32xf32>
    %cst_28 = arith.constant dense<0.000000e+00> : vector<32x512xf32>
    %37 = tpu.matmul %36, %34, %cst_28 {dimension_numbers = #tpu.dot_dimension_numbers<[1], [0], [0], [1], [0, 0, 1, 1], [], []>} : vector<32x32xf32>, vector<32x512xf32>, vector<32x512xf32> -> vector<32x512xf32>
    %38 = arith.addf %30, %37 : vector<32x512xf32>
    %c1_i32 = arith.constant 1 : i32
    %39 = tpu.dynamic_rotate %11 by %c1_i32 dim 1 : vector<32x512xf32>, i32 -> vector<32x512xf32>
    %c3 = arith.constant 3 : index
    %c0_29 = arith.constant 0 : index
    %40 = vector.load %arg6[%c3, %c0_29] : memref<9x512xf32, #tpu.memory_space<vmem>>, vector<1x512xf32>
    %41 = vector.broadcast %40 : vector<1x512xf32> to vector<32x512xf32>
    %42 = arith.mulf %39, %41 : vector<32x512xf32>
    %c3_30 = arith.constant 3 : index
    %c0_31 = arith.constant 0 : index
    %c0_32 = arith.constant 0 : index
    %43 = vector.load %arg4[%c3_30, %c0_31, %c0_32] : memref<9x32x32xf32, #tpu.memory_space<vmem>>, vector<1x32x32xf32>
    %44 = vector.shape_cast %43 : vector<1x32x32xf32> to vector<32x32xf32>
    %cst_33 = arith.constant dense<0.000000e+00> : vector<32x512xf32>
    %45 = tpu.matmul %44, %42, %cst_33 {dimension_numbers = #tpu.dot_dimension_numbers<[1], [0], [0], [1], [0, 0, 1, 1], [], []>} : vector<32x32xf32>, vector<32x512xf32>, vector<32x512xf32> -> vector<32x512xf32>
    %46 = arith.addf %38, %45 : vector<32x512xf32>
    %c511_i32 = arith.constant 511 : i32
    %47 = tpu.dynamic_rotate %11 by %c511_i32 dim 1 : vector<32x512xf32>, i32 -> vector<32x512xf32>
    %c5 = arith.constant 5 : index
    %c0_34 = arith.constant 0 : index
    %48 = vector.load %arg6[%c5, %c0_34] : memref<9x512xf32, #tpu.memory_space<vmem>>, vector<1x512xf32>
    %49 = vector.broadcast %48 : vector<1x512xf32> to vector<32x512xf32>
    %50 = arith.mulf %47, %49 : vector<32x512xf32>
    %c5_35 = arith.constant 5 : index
    %c0_36 = arith.constant 0 : index
    %c0_37 = arith.constant 0 : index
    %51 = vector.load %arg4[%c5_35, %c0_36, %c0_37] : memref<9x32x32xf32, #tpu.memory_space<vmem>>, vector<1x32x32xf32>
    %52 = vector.shape_cast %51 : vector<1x32x32xf32> to vector<32x32xf32>
    %cst_38 = arith.constant dense<0.000000e+00> : vector<32x512xf32>
    %53 = tpu.matmul %52, %50, %cst_38 {dimension_numbers = #tpu.dot_dimension_numbers<[1], [0], [0], [1], [0, 0, 1, 1], [], []>} : vector<32x32xf32>, vector<32x512xf32>, vector<32x512xf32> -> vector<32x512xf32>
    %54 = arith.addf %46, %53 : vector<32x512xf32>
    %c497_i32 = arith.constant 497 : i32
    %55 = tpu.dynamic_rotate %11 by %c497_i32 dim 1 : vector<32x512xf32>, i32 -> vector<32x512xf32>
    %c6 = arith.constant 6 : index
    %c0_39 = arith.constant 0 : index
    %56 = vector.load %arg6[%c6, %c0_39] : memref<9x512xf32, #tpu.memory_space<vmem>>, vector<1x512xf32>
    %57 = vector.broadcast %56 : vector<1x512xf32> to vector<32x512xf32>
    %58 = arith.mulf %55, %57 : vector<32x512xf32>
    %c6_40 = arith.constant 6 : index
    %c0_41 = arith.constant 0 : index
    %c0_42 = arith.constant 0 : index
    %59 = vector.load %arg4[%c6_40, %c0_41, %c0_42] : memref<9x32x32xf32, #tpu.memory_space<vmem>>, vector<1x32x32xf32>
    %60 = vector.shape_cast %59 : vector<1x32x32xf32> to vector<32x32xf32>
    %cst_43 = arith.constant dense<0.000000e+00> : vector<32x512xf32>
    %61 = tpu.matmul %60, %58, %cst_43 {dimension_numbers = #tpu.dot_dimension_numbers<[1], [0], [0], [1], [0, 0, 1, 1], [], []>} : vector<32x32xf32>, vector<32x512xf32>, vector<32x512xf32> -> vector<32x512xf32>
    %62 = arith.addf %54, %61 : vector<32x512xf32>
    %c496_i32 = arith.constant 496 : i32
    %63 = tpu.dynamic_rotate %11 by %c496_i32 dim 1 : vector<32x512xf32>, i32 -> vector<32x512xf32>
    %c7 = arith.constant 7 : index
    %c0_44 = arith.constant 0 : index
    %64 = vector.load %arg6[%c7, %c0_44] : memref<9x512xf32, #tpu.memory_space<vmem>>, vector<1x512xf32>
    %65 = vector.broadcast %64 : vector<1x512xf32> to vector<32x512xf32>
    %66 = arith.mulf %63, %65 : vector<32x512xf32>
    %c7_45 = arith.constant 7 : index
    %c0_46 = arith.constant 0 : index
    %c0_47 = arith.constant 0 : index
    %67 = vector.load %arg4[%c7_45, %c0_46, %c0_47] : memref<9x32x32xf32, #tpu.memory_space<vmem>>, vector<1x32x32xf32>
    %68 = vector.shape_cast %67 : vector<1x32x32xf32> to vector<32x32xf32>
    %cst_48 = arith.constant dense<0.000000e+00> : vector<32x512xf32>
    %69 = tpu.matmul %68, %66, %cst_48 {dimension_numbers = #tpu.dot_dimension_numbers<[1], [0], [0], [1], [0, 0, 1, 1], [], []>} : vector<32x32xf32>, vector<32x512xf32>, vector<32x512xf32> -> vector<32x512xf32>
    %70 = arith.addf %62, %69 : vector<32x512xf32>
    %c495_i32 = arith.constant 495 : i32
    %71 = tpu.dynamic_rotate %11 by %c495_i32 dim 1 : vector<32x512xf32>, i32 -> vector<32x512xf32>
    %c8 = arith.constant 8 : index
    %c0_49 = arith.constant 0 : index
    %72 = vector.load %arg6[%c8, %c0_49] : memref<9x512xf32, #tpu.memory_space<vmem>>, vector<1x512xf32>
    %73 = vector.broadcast %72 : vector<1x512xf32> to vector<32x512xf32>
    %74 = arith.mulf %71, %73 : vector<32x512xf32>
    %c8_50 = arith.constant 8 : index
    %c0_51 = arith.constant 0 : index
    %c0_52 = arith.constant 0 : index
    %75 = vector.load %arg4[%c8_50, %c0_51, %c0_52] : memref<9x32x32xf32, #tpu.memory_space<vmem>>, vector<1x32x32xf32>
    %76 = vector.shape_cast %75 : vector<1x32x32xf32> to vector<32x32xf32>
    %cst_53 = arith.constant dense<0.000000e+00> : vector<32x512xf32>
    %77 = tpu.matmul %76, %74, %cst_53 {dimension_numbers = #tpu.dot_dimension_numbers<[1], [0], [0], [1], [0, 0, 1, 1], [], []>} : vector<32x32xf32>, vector<32x512xf32>, vector<32x512xf32> -> vector<32x512xf32>
    %78 = arith.addf %70, %77 : vector<32x512xf32>
    %c0_54 = arith.constant 0 : index
    %c0_55 = arith.constant 0 : index
    %79 = vector.load %arg5[%c0_54, %c0_55] : memref<32x1xf32, #tpu.memory_space<vmem>>, vector<32x1xf32>
    %80 = vector.broadcast %79 : vector<32x1xf32> to vector<32x512xf32>
    %81 = arith.addf %78, %80 : vector<32x512xf32>
    %cst_56 = arith.constant 0.000000e+00 : f32
    %82 = vector.broadcast %cst_56 : f32 to vector<32x512xf32>
    %83 = arith.maximumf %81, %82 : vector<32x512xf32>
    %84 = vector.extract_strided_slice %83 {offsets = [0, 0], sizes = [32, 256], strides = [1, 1]} : vector<32x512xf32> to vector<32x256xf32>
    %c0_57 = arith.constant 0 : index
    %c0_58 = arith.constant 0 : index
    %c0_59 = arith.constant 0 : index
    %85 = vector.load %arg7[%c0_57, %c0_58, %c0_59] : memref<2x32x256xf32, #tpu.memory_space<vmem>>, vector<1x32x256xf32>
    %86 = vector.shape_cast %85 : vector<1x32x256xf32> to vector<32x256xf32>
    %87 = vector.shape_cast %84 : vector<32x256xf32> to vector<1x32x256xf32>
    tpu.vector_store %arg7[%c0_57, %c0_58, %c0_59], %87 {strides = array<i32>} : memref<2x32x256xf32, #tpu.memory_space<vmem>>, vector<1x32x256xf32>,
    %88 = vector.extract_strided_slice %83 {offsets = [0, 256], sizes = [32, 256], strides = [1, 1]} : vector<32x512xf32> to vector<32x256xf32>
    %c1_60 = arith.constant 1 : index
    %c0_61 = arith.constant 0 : index
    %c0_62 = arith.constant 0 : index
    %89 = vector.load %arg7[%c1_60, %c0_61, %c0_62] : memref<2x32x256xf32, #tpu.memory_space<vmem>>, vector<1x32x256xf32>
    %90 = vector.shape_cast %89 : vector<1x32x256xf32> to vector<32x256xf32>
    %91 = vector.shape_cast %88 : vector<32x256xf32> to vector<1x32x256xf32>
    tpu.vector_store %arg7[%c1_60, %c0_61, %c0_62], %91 {strides = array<i32>} : memref<2x32x256xf32, #tpu.memory_space<vmem>>, vector<1x32x256xf32>,
    return
  }
  func.func @transform_0(%arg0: i32) -> (i32, i32, i32) {
    %c0_i32 = arith.constant 0 : i32
    %c0_i32_0 = arith.constant 0 : i32
    %c0_i32_1 = arith.constant 0 : i32
    return %arg0, %c0_i32, %c0_i32_0 : i32, i32, i32
  }
  func.func @transform_1(%arg0: i32) -> (i32, i32) {
    %c0_i32 = arith.constant 0 : i32
    %c0_i32_0 = arith.constant 0 : i32
    %c0_i32_1 = arith.constant 0 : i32
    return %c0_i32, %c0_i32_0 : i32, i32
  }
  func.func @transform_2(%arg0: i32) -> (i32, i32) {
    %c0_i32 = arith.constant 0 : i32
    %c0_i32_0 = arith.constant 0 : i32
    %c0_i32_1 = arith.constant 0 : i32
    return %c0_i32, %c0_i32_0 : i32, i32
  }
  func.func @transform_3(%arg0: i32) -> (i32, i32, i32) {
    %c0_i32 = arith.constant 0 : i32
    %c0_i32_0 = arith.constant 0 : i32
    %c0_i32_1 = arith.constant 0 : i32
    %c0_i32_2 = arith.constant 0 : i32
    return %c0_i32, %c0_i32_0, %c0_i32_1 : i32, i32, i32
  }
  func.func @transform_4(%arg0: i32) -> (i32, i32) {
    %c0_i32 = arith.constant 0 : i32
    %c0_i32_0 = arith.constant 0 : i32
    %c0_i32_1 = arith.constant 0 : i32
    return %c0_i32, %c0_i32_0 : i32, i32
  }
  func.func @transform_5(%arg0: i32) -> (i32, i32) {
    %c0_i32 = arith.constant 0 : i32
    %c0_i32_0 = arith.constant 0 : i32
    %c0_i32_1 = arith.constant 0 : i32
    return %c0_i32, %c0_i32_0 : i32, i32
  }
  func.func @transform_6(%arg0: i32) -> (i32, i32, i32) {
    %c0_i32 = arith.constant 0 : i32
    %c0_i32_0 = arith.constant 0 : i32
    %c0_i32_1 = arith.constant 0 : i32
    return %arg0, %c0_i32, %c0_i32_0 : i32, i32, i32
  }
}

</mosaic_0001>

<llo_original>
// kernel: head_forward.1
$region0: #{head_forward.1}
  #allocation0 [shape = 'u32[]', space=smem, size = 0x4, offset = 0x4, fixed_abs, tag = 'smem constant byte address 0x4 - core index']
  #allocation1 [shape = 'u32[144,128]{1,0:T(1,128)}', space=vmem, size = 0x12000, scoped, tag = 'internal scratch']
  %s0 = inlined_call_operand.vmem [shape: f32[2,32,256], index: 0, kind: input, shape index: {}]
  %s1 = inlined_call_operand.vmem [shape: f32[32,32], index: 1, kind: input, shape index: {}]
  %s2 = inlined_call_operand.vmem [shape: f32[32,1], index: 2, kind: input, shape index: {}]
  %s3 = inlined_call_operand.vmem [shape: f32[9,32,32], index: 3, kind: input, shape index: {}]
  %s4 = inlined_call_operand.vmem [shape: f32[32,1], index: 4, kind: input, shape index: {}]
  %s5 = inlined_call_operand.vmem [shape: f32[9,512], index: 5, kind: input, shape index: {}]
  %s6 = inlined_call_operand.vmem [shape: f32[2,32,256], index: 6, kind: output, shape index: {}]
  %s7 = sld [smem:[#allocation0]]
  $region34: #{head_forward.1} parent=0
    _
  %s9 = ssub.s32 1, %s7
  %s10 = scalar_select 0, %s9, %s7
  // Predicated region
  $region2: #{head_forward.1} parent=0 // pred_check
    _
  $region3: #{head_forward.1} parent=0 // pred_check_branch
    %12 = sbr.rel (0) target = $region5
  $region4: #{head_forward.1} parent=0 // pred_region
    _
  $region5: #{head_forward.1} parent=0 // pred_fallthru
    _
  // Predicated region
  $region6: #{head_forward.1} parent=0 // pred_check
    _
  $region7: #{head_forward.1} parent=0 // pred_check_branch
    %14 = sbr.rel (0) target = $region9
  $region8: #{head_forward.1} parent=0 // pred_region
    _
  $region9: #{head_forward.1} parent=0 // pred_fallthru
    _
  // Predicated region
  $region10: #{head_forward.1} parent=0 // pred_check
    _
  $region11: #{head_forward.1} parent=0 // pred_check_branch
    %16 = sbr.rel (0) target = $region13
  $region12: #{head_forward.1} parent=0 // pred_region
    _
  $region13: #{head_forward.1} parent=0 // pred_fallthru
    _
  // Predicated region
  $region14: #{head_forward.1} parent=0 // pred_check
    _
  $region15: #{head_forward.1} parent=0 // pred_check_branch
    %18 = sbr.rel (0) target = $region17
  $region16: #{head_forward.1} parent=0 // pred_region
    _
  $region17: #{head_forward.1} parent=0 // pred_fallthru
    _
  // Predicated region
  $region18: #{head_forward.1} parent=0 // pred_check
    _
  $region19: #{head_forward.1} parent=0 // pred_check_branch
    %20 = sbr.rel (0) target = $region21
  $region20: #{head_forward.1} parent=0 // pred_region
    _
  $region21: #{head_forward.1} parent=0 // pred_fallthru
    _
  // Predicated region
  $region22: #{head_forward.1} parent=0 // pred_check
    _
  $region23: #{head_forward.1} parent=0 // pred_check_branch
    %22 = sbr.rel (0) target = $region25
  $region24: #{head_forward.1} parent=0 // pred_region
    _
  $region25: #{head_forward.1} parent=0 // pred_fallthru
    _
  %v23 = vld [vmem:[%s0] sm:$0xff]
  %v24 = vld [vmem:[%s0 + $0x8] sm:$0xff]
  %v25 = vld [vmem:[%s0 + $0x10] sm:$0xff]
  %v26 = vld [vmem:[%s0 + $0x18] sm:$0xff]
  %v27 = vld [vmem:[%s0 + $0x20] sm:$0xff]
  %v28 = vld [vmem:[%s0 + $0x28] sm:$0xff]
  %v29 = vld [vmem:[%s0 + $0x30] sm:$0xff]
  %v30 = vld [vmem:[%s0 + $0x38] sm:$0xff]
  %s31 = scalar_lea.vmem %s0, 64
  %v32 = vld [vmem:[%s31] sm:$0xff]
  %v33 = vld [vmem:[%s31 + $0x8] sm:$0xff]
  %v34 = vld [vmem:[%s31 + $0x10] sm:$0xff]
  %v35 = vld [vmem:[%s31 + $0x18] sm:$0xff]
  %v36 = vld [vmem:[%s31 + $0x20] sm:$0xff]
  %v37 = vld [vmem:[%s31 + $0x28] sm:$0xff]
  %v38 = vld [vmem:[%s31 + $0x30] sm:$0xff]
  %v39 = vld [vmem:[%s31 + $0x38] sm:$0xff]
  %v40 = vld [vmem:[%s1] sm:$0xff]
  %v41 = vld [vmem:[%s1 + $0x8] sm:$0xff]
  %v42 = vld [vmem:[%s1 + $0x10] sm:$0xff]
  %v43 = vld [vmem:[%s1 + $0x18] sm:$0xff]
  %v44 = vld [vmem:[%s2] sm:$0xff]
  %v45 = vld [vmem:[%s2 + $0x8] sm:$0xff]
  %v46 = vld [vmem:[%s2 + $0x10] sm:$0xff]
  %v47 = vld [vmem:[%s2 + $0x18] sm:$0xff]
  %49 = vset.pattern.permute.xlu0 0
  %50 = vperm.xlu0 %49, %v44
  %v51 = vpop.permute.xlu0 %50
  %54 = vset.pattern.permute.xlu0 0
  %55 = vperm.xlu0 %54, %v45
  %v56 = vpop.permute.xlu0 %55
  %59 = vset.pattern.permute.xlu0 0
  %60 = vperm.xlu0 %59, %v46
  %v61 = vpop.permute.xlu0 %60
  %64 = vset.pattern.permute.xlu0 0
  %65 = vperm.xlu0 %64, %v47
  %v66 = vpop.permute.xlu0 %65
  %vm68 = vcmask 261120
  %v70 = vsel %vm68, %v40, 0
  %v73 = vsel %vm68, %v41, 0
  %v76 = vsel %vm68, %v42, 0
  %v79 = vsel %vm68, %v43, 0
  %81 = vmatprep.subr.mxu0 0.0
  %82 = vmatpush1.msra.mxu0 0.0
  %83 = vmatprep.subr.mxu0 0.0
  %84 = vmatpush1.msra.mxu0 0.0
  %85 = vmatprep.subr.mxu0 0.0
  %86 = vmatpush1.msra.mxu0 0.0
  %87 = vmatprep.subr.mxu0 0.0
  %88 = vmatpush1.msra.mxu0 0.0
  %89 = vmatprep.subr.mxu0 0.0
  %90 = vmatpush1.msra.mxu0 0.0
  %91 = vmatprep.subr.mxu0 0.0
  %92 = vmatpush1.msra.mxu0 0.0
  %93 = vmatprep.subr.mxu0 0.0
  %94 = vmatpush1.msra.mxu0 0.0
  %95 = vmatprep.subr.mxu0 0.0
  %96 = vmatpush1.msra.mxu0 0.0
  %97 = vmatprep.subr.mxu0 0.0
  %98 = vmatpush1.msra.mxu0 0.0
  %99 = vmatprep.subr.mxu0 0.0
  %100 = vmatpush1.msra.mxu0 0.0
  %101 = vmatprep.subr.mxu0 0.0
  %102 = vmatpush1.msra.mxu0 0.0
  %103 = vmatprep.subr.mxu0 0.0
  %104 = vmatpush1.msra.mxu0 0.0
  %105 = vmatprep.subr.mxu0 %v30
  %106 = vmatpush1.msra.mxu0 %v29
  %107 = vmatprep.subr.mxu0 %v28
  %108 = vmatpush1.msra.mxu0 %v27
  %109 = vmatprep.subr.mxu0 %v26
  %110 = vmatpush1.msra.mxu0 %v25
  %111 = vmatprep.subr.mxu0 %v24
  %112 = vmatpush1.msra.mxu0 %v23
  %113 = vmatprep.subr.mxu0 0.0
  %114 = vmatpush2.msra.mxu0 0.0
  %115 = vmatprep.subr.mxu0 0.0
  %116 = vmatpush2.msra.mxu0 0.0
  %117 = vmatprep.subr.mxu0 0.0
  %118 = vmatpush2.msra.mxu0 0.0
  %119 = vmatprep.subr.mxu0 0.0
  %120 = vmatpush2.msra.mxu0 0.0
  %121 = vmatprep.subr.mxu0 0.0
  %122 = vmatpush2.msra.mxu0 0.0
  %123 = vmatprep.subr.mxu0 0.0
  %124 = vmatpush2.msra.mxu0 0.0
  %125 = vmatprep.subr.mxu0 0.0
  %126 = vmatpush2.msra.mxu0 0.0
  %127 = vmatprep.subr.mxu0 0.0
  %128 = vmatpush2.msra.mxu0 0.0
  %129 = vmatprep.subr.mxu0 0.0
  %130 = vmatpush2.msra.mxu0 0.0
  %131 = vmatprep.subr.mxu0 0.0
  %132 = vmatpush2.msra.mxu0 0.0
  %133 = vmatprep.subr.mxu0 0.0
  %134 = vmatpush2.msra.mxu0 0.0
  %135 = vmatprep.subr.mxu0 0.0
  %136 = vmatpush2.msra.mxu0 0.0
  %137 = vmatprep.subr.mxu0 0.0
  %138 = vmatpush2.msra.mxu0 0.0
  %139 = vmatprep.subr.mxu0 0.0
  %140 = vmatpush2.msra.mxu0 0.0
  %141 = vmatprep.subr.mxu0 0.0
  %142 = vmatpush2.msra.mxu0 0.0
  %143 = vmatprep.subr.mxu0 0.0
  %144 = vmatpush2.msra.mxu0 0.0
  %145 = vmatprep.mubr.f32.mxu0 0.0
  %146 = vmatmul.mubr.f32.gmra.mxu0 %v70
  %v147 = vpop.f32.mrf.mxu0
  %v148 = vadd.f32 %v51, %v147
  %v149 = vpop.f32.mrf.mxu0
  %v150 = vadd.f32 %v51, %v149
  %151 = vmatprep.mubr.f32.mxu0 0.0
  %152 = vmatmul.mubr.f32.gmra.mxu0 %v73
  %v153 = vpop.f32.mrf.mxu0
  %v154 = vadd.f32 %v56, %v153
  %v155 = vpop.f32.mrf.mxu0
  %v156 = vadd.f32 %v56, %v155
  %157 = vmatprep.mubr.f32.mxu0 0.0
  %158 = vmatmul.mubr.f32.gmra.mxu0 %v76
  %v159 = vpop.f32.mrf.mxu0
  %v160 = vadd.f32 %v61, %v159
  %v161 = vpop.f32.mrf.mxu0
  %v162 = vadd.f32 %v61, %v161
  %163 = vmatprep.mubr.f32.mxu0 0.0
  %164 = vmatmul.mubr.f32.gmra.mxu0 %v79
  %v165 = vpop.f32.mrf.mxu0
  %v166 = vadd.f32 %v66, %v165
  %v167 = vpop.f32.mrf.mxu0
  %v168 = vadd.f32 %v66, %v167
  %169 = vdwg.mxu0
  %170 = vmatprep.subr.mxu0 0.0
  %171 = vmatpush1.msra.mxu0 0.0
  %172 = vmatprep.subr.mxu0 0.0
  %173 = vmatpush1.msra.mxu0 0.0
  %174 = vmatprep.subr.mxu0 0.0
  %175 = vmatpush1.msra.mxu0 0.0
  %176 = vmatprep.subr.mxu0 0.0
  %177 = vmatpush1.msra.mxu0 0.0
  %178 = vmatprep.subr.mxu0 0.0
  %179 = vmatpush1.msra.mxu0 0.0
  %180 = vmatprep.subr.mxu0 0.0
  %181 = vmatpush1.msra.mxu0 0.0
  %182 = vmatprep.subr.mxu0 0.0
  %183 = vmatpush1.msra.mxu0 0.0
  %184 = vmatprep.subr.mxu0 0.0
  %185 = vmatpush1.msra.mxu0 0.0
  %186 = vmatprep.subr.mxu0 0.0
  %187 = vmatpush1.msra.mxu0 0.0
  %188 = vmatprep.subr.mxu0 0.0
  %189 = vmatpush1.msra.mxu0 0.0
  %190 = vmatprep.subr.mxu0 0.0
  %191 = vmatpush1.msra.mxu0 0.0
  %192 = vmatprep.subr.mxu0 0.0
  %193 = vmatpush1.msra.mxu0 0.0
  %194 = vmatprep.subr.mxu0 %v39
  %195 = vmatpush1.msra.mxu0 %v38
  %196 = vmatprep.subr.mxu0 %v37
  %197 = vmatpush1.msra.mxu0 %v36
  %198 = vmatprep.subr.mxu0 %v35
  %199 = vmatpush1.msra.mxu0 %v34
  %200 = vmatprep.subr.mxu0 %v33
  %201 = vmatpush1.msra.mxu0 %v32
  %202 = vmatprep.subr.mxu0 0.0
  %203 = vmatpush2.msra.mxu0 0.0
  %204 = vmatprep.subr.mxu0 0.0
  %205 = vmatpush2.msra.mxu0 0.0
  %206 = vmatprep.subr.mxu0 0.0
  %207 = vmatpush2.msra.mxu0 0.0
  %208 = vmatprep.subr.mxu0 0.0
  %209 = vmatpush2.msra.mxu0 0.0
  %210 = vmatprep.subr.mxu0 0.0
  %211 = vmatpush2.msra.mxu0 0.0
  %212 = vmatprep.subr.mxu0 0.0
  %213 = vmatpush2.msra.mxu0 0.0
  %214 = vmatprep.subr.mxu0 0.0
  %215 = vmatpush2.msra.mxu0 0.0
  %216 = vmatprep.subr.mxu0 0.0
  %217 = vmatpush2.msra.mxu0 0.0
  %218 = vmatprep.subr.mxu0 0.0
  %219 = vmatpush2.msra.mxu0 0.0
  %220 = vmatprep.subr.mxu0 0.0
  %221 = vmatpush2.msra.mxu0 0.0
  %222 = vmatprep.subr.mxu0 0.0
  %223 = vmatpush2.msra.mxu0 0.0
  %224 = vmatprep.subr.mxu0 0.0
  %225 = vmatpush2.msra.mxu0 0.0
  %226 = vmatprep.subr.mxu0 0.0
  %227 = vmatpush2.msra.mxu0 0.0
  %228 = vmatprep.subr.mxu0 0.0
  %229 = vmatpush2.msra.mxu0 0.0
  %230 = vmatprep.subr.mxu0 0.0
  %231 = vmatpush2.msra.mxu0 0.0
  %232 = vmatprep.subr.mxu0 0.0
  %233 = vmatpush2.msra.mxu0 0.0
  %234 = vmatprep.mubr.f32.mxu0 0.0
  %235 = vmatmul.mubr.f32.gmra.mxu0 %v70
  %v236 = vpop.f32.mrf.mxu0
  %v237 = vadd.f32 %v51, %v236
  %v238 = vpop.f32.mrf.mxu0
  %v239 = vadd.f32 %v51, %v238
  %240 = vmatprep.mubr.f32.mxu0 0.0
  %241 = vmatmul.mubr.f32.gmra.mxu0 %v73
  %v242 = vpop.f32.mrf.mxu0
  %v243 = vadd.f32 %v56, %v242
  %v244 = vpop.f32.mrf.mxu0
  %v245 = vadd.f32 %v56, %v244
  %246 = vmatprep.mubr.f32.mxu0 0.0
  %247 = vmatmul.mubr.f32.gmra.mxu0 %v76
  %v248 = vpop.f32.mrf.mxu0
  %v249 = vadd.f32 %v61, %v248
  %v250 = vpop.f32.mrf.mxu0
  %v251 = vadd.f32 %v61, %v250
  %252 = vmatprep.mubr.f32.mxu0 0.0
  %253 = vmatmul.mubr.f32.gmra.mxu0 %v79
  %v254 = vpop.f32.mrf.mxu0
  %v255 = vadd.f32 %v66, %v254
  %v256 = vpop.f32.mrf.mxu0
  %v257 = vadd.f32 %v66, %v256
  %258 = vdwg.mxu0
  %v259 = vmax.f32 %v148, 0.0
  %v260 = vmax.f32 %v150, 0.0
  %v261 = vmax.f32 %v237, 0.0
  %v262 = vmax.f32 %v239, 0.0
  %v263 = vmax.f32 %v154, 0.0
  %v264 = vmax.f32 %v156, 0.0
  %v265 = vmax.f32 %v243, 0.0
  %v266 = vmax.f32 %v245, 0.0
  %v267 = vmax.f32 %v160, 0.0
  %v268 = vmax.f32 %v162, 0.0
  %v269 = vmax.f32 %v249, 0.0
  %v270 = vmax.f32 %v251, 0.0
  %v271 = vmax.f32 %v166, 0.0
  %v272 = vmax.f32 %v168, 0.0
  %v273 = vmax.f32 %v255, 0.0
  %v274 = vmax.f32 %v257, 0.0
  %s275 = scalar_lea.vmem %s3, 128
  %v276 = vld [vmem:[%s275] sm:$0xff]
  %v277 = vld [vmem:[%s275 + $0x8] sm:$0xff]
  %v278 = vld [vmem:[%s275 + $0x10] sm:$0xff]
  %v279 = vld [vmem:[%s275 + $0x18] sm:$0xff]
  %280 = vrot.lane.b32.xlu0 %v259, 17
  %v281 = vpop.permute.xlu0 %280
  %282 = vrot.lane.b32.xlu0 %v263, 17
  %v283 = vpop.permute.xlu0 %282
  %284 = vrot.lane.b32.xlu0 %v267, 17
  %v285 = vpop.permute.xlu0 %284
  %286 = vrot.lane.b32.xlu0 %v271, 17
  %v287 = vpop.permute.xlu0 %286
  %288 = vrot.lane.b32.xlu0 %v260, 17
  %v289 = vpop.permute.xlu0 %288
  %290 = vrot.lane.b32.xlu0 %v264, 17
  %v291 = vpop.permute.xlu0 %290
  %292 = vrot.lane.b32.xlu0 %v268, 17
  %v293 = vpop.permute.xlu0 %292
  %294 = vrot.lane.b32.xlu0 %v272, 17
  %v295 = vpop.permute.xlu0 %294
  %296 = vrot.lane.b32.xlu0 %v261, 17
  %v297 = vpop.permute.xlu0 %296
  %298 = vrot.lane.b32.xlu0 %v265, 17
  %v299 = vpop.permute.xlu0 %298
  %300 = vrot.lane.b32.xlu0 %v269, 17
  %v301 = vpop.permute.xlu0 %300
  %302 = vrot.lane.b32.xlu0 %v273, 17
  %v303 = vpop.permute.xlu0 %302
  %304 = vrot.lane.b32.xlu0 %v262, 17
  %v305 = vpop.permute.xlu0 %304
  %306 = vrot.lane.b32.xlu0 %v266, 17
  %v307 = vpop.permute.xlu0 %306
  %308 = vrot.lane.b32.xlu0 %v270, 17
  %v309 = vpop.permute.xlu0 %308
  %310 = vrot.lane.b32.xlu0 %v274, 17
  %v311 = vpop.permute.xlu0 %310
  %v312 = vlaneseq
  %v313 = vand.u32 %v312, 127
  %vm314 = vcmp.lt.s32.totalorder %v313, 17
  %v315 = vsel %vm314, %v297, %v305
  %v316 = vsel %vm314, %v299, %v307
  %v317 = vsel %vm314, %v301, %v309
  %v318 = vsel %vm314, %v303, %v311
  %v319 = vsel %vm314, %v289, %v297
  %v320 = vsel %vm314, %v291, %v299
  %v321 = vsel %vm314, %v293, %v301
  %v322 = vsel %vm314, %v295, %v303
  %v323 = vsel %vm314, %v281, %v289
  %v324 = vsel %vm314, %v283, %v291
  %v325 = vsel %vm314, %v285, %v293
  %v326 = vsel %vm314, %v287, %v295
  %v327 = vsel %vm314, %v305, %v281
  %v328 = vsel %vm314, %v307, %v283
  %v329 = vsel %vm314, %v309, %v285
  %v330 = vsel %vm314, %v311, %v287
  %v331 = vld [vmem:[%s5] ss:$8 sm:$0xf]
  %v333 = vlaneseq
  %v334 = vshrl.u32 %v333, 7
  %v335 = vsub.s32 0, %v334
  %v336 = vrot.slane %v331, %v335
  %v337 = vlaneseq
  %v338 = vshrl.u32 %v337, 7
  %v339 = vsub.s32 1, %v338
  %v340 = vrot.slane %v331, %v339
  %v341 = vlaneseq
  %v342 = vshrl.u32 %v341, 7
  %v343 = vsub.s32 2, %v342
  %v344 = vrot.slane %v331, %v343
  %v345 = vlaneseq
  %v346 = vshrl.u32 %v345, 7
  %v347 = vsub.s32 3, %v346
  %v348 = vrot.slane %v331, %v347
  %v353 = vmul.f32 %v327, %v336
  %v354 = vmul.f32 %v323, %v340
  %v355 = vmul.f32 %v319, %v344
  %v356 = vmul.f32 %v315, %v348
  %v357 = vmul.f32 %v328, %v336
  %v358 = vmul.f32 %v324, %v340
  %v359 = vmul.f32 %v320, %v344
  %v360 = vmul.f32 %v316, %v348
  %v361 = vmul.f32 %v329, %v336
  %v362 = vmul.f32 %v325, %v340
  %v363 = vmul.f32 %v321, %v344
  %v364 = vmul.f32 %v317, %v348
  %v365 = vmul.f32 %v330, %v336
  %v366 = vmul.f32 %v326, %v340
  %v367 = vmul.f32 %v322, %v344
  %v368 = vmul.f32 %v318, %v348
  %v369 = vld [vmem:[%s3] sm:$0xff]
  %v370 = vld [vmem:[%s3 + $0x8] sm:$0xff]
  %v371 = vld [vmem:[%s3 + $0x10] sm:$0xff]
  %v372 = vld [vmem:[%s3 + $0x18] sm:$0xff]
  %v374 = vsel %vm68, %v369, 0
  %v377 = vsel %vm68, %v370, 0
  %v380 = vsel %vm68, %v371, 0
  %v383 = vsel %vm68, %v372, 0
  %385 = vmatprep.subr.mxu0 0.0
  %386 = vmatpush1.msra.mxu0 0.0
  %387 = vmatprep.subr.mxu0 0.0
  %388 = vmatpush1.msra.mxu0 0.0
  %389 = vmatprep.subr.mxu0 0.0
  %390 = vmatpush1.msra.mxu0 0.0
  %391 = vmatprep.subr.mxu0 0.0
  %392 = vmatpush1.msra.mxu0 0.0
  %393 = vmatprep.subr.mxu0 0.0
  %394 = vmatpush1.msra.mxu0 0.0
  %395 = vmatprep.subr.mxu0 0.0
  %396 = vmatpush1.msra.mxu0 0.0
  %397 = vmatprep.subr.mxu0 0.0
  %398 = vmatpush1.msra.mxu0 0.0
  %399 = vmatprep.subr.mxu0 0.0
  %400 = vmatpush1.msra.mxu0 0.0
  %401 = vmatprep.subr.mxu0 0.0
  %402 = vmatpush1.msra.mxu0 0.0
  %403 = vmatprep.subr.mxu0 0.0
  %404 = vmatpush1.msra.mxu0 0.0
  %405 = vmatprep.subr.mxu0 0.0
  %406 = vmatpush1.msra.mxu0 0.0
  %407 = vmatprep.subr.mxu0 0.0
  %408 = vmatpush1.msra.mxu0 0.0
  %409 = vmatprep.subr.mxu0 %v366
  %410 = vmatpush1.msra.mxu0 %v365
  %411 = vmatprep.subr.mxu0 %v362
  %412 = vmatpush1.msra.mxu0 %v361
  %413 = vmatprep.subr.mxu0 %v358
  %414 = vmatpush1.msra.mxu0 %v357
  %415 = vmatprep.subr.mxu0 %v354
  %416 = vmatpush1.msra.mxu0 %v353
  %417 = vmatprep.subr.mxu0 0.0
  %418 = vmatpush2.msra.mxu0 0.0
  %419 = vmatprep.subr.mxu0 0.0
  %420 = vmatpush2.msra.mxu0 0.0
  %421 = vmatprep.subr.mxu0 0.0
  %422 = vmatpush2.msra.mxu0 0.0
  %423 = vmatprep.subr.mxu0 0.0
  %424 = vmatpush2.msra.mxu0 0.0
  %425 = vmatprep.subr.mxu0 0.0
  %426 = vmatpush2.msra.mxu0 0.0
  %427 = vmatprep.subr.mxu0 0.0
  %428 = vmatpush2.msra.mxu0 0.0
  %429 = vmatprep.subr.mxu0 0.0
  %430 = vmatpush2.msra.mxu0 0.0
  %431 = vmatprep.subr.mxu0 0.0
  %432 = vmatpush2.msra.mxu0 0.0
  %433 = vmatprep.subr.mxu0 0.0
  %434 = vmatpush2.msra.mxu0 0.0
  %435 = vmatprep.subr.mxu0 0.0
  %436 = vmatpush2.msra.mxu0 0.0
  %437 = vmatprep.subr.mxu0 0.0
  %438 = vmatpush2.msra.mxu0 0.0
  %439 = vmatprep.subr.mxu0 0.0
  %440 = vmatpush2.msra.mxu0 0.0
  %441 = vmatprep.subr.mxu0 0.0
  %442 = vmatpush2.msra.mxu0 0.0
  %443 = vmatprep.subr.mxu0 0.0
  %444 = vmatpush2.msra.mxu0 0.0
  %445 = vmatprep.subr.mxu0 0.0
  %446 = vmatpush2.msra.mxu0 0.0
  %447 = vmatprep.subr.mxu0 0.0
  %448 = vmatpush2.msra.mxu0 0.0
  %449 = vmatprep.mubr.f32.mxu0 0.0
  %450 = vmatmul.mubr.f32.gmra.mxu0 %v374
  %v451 = vpop.f32.mrf.mxu0
  %v452 = vadd.f32 0.0, %v451
  %v453 = vpop.f32.mrf.mxu0
  %v454 = vadd.f32 0.0, %v453
  %455 = vmatprep.mubr.f32.mxu0 0.0
  %456 = vmatmul.mubr.f32.gmra.mxu0 %v377
  %v457 = vpop.f32.mrf.mxu0
  %v458 = vadd.f32 0.0, %v457
  %v459 = vpop.f32.mrf.mxu0
  %v460 = vadd.f32 0.0, %v459
  %461 = vmatprep.mubr.f32.mxu0 0.0
  %462 = vmatmul.mubr.f32.gmra.mxu0 %v380
  %v463 = vpop.f32.mrf.mxu0
  %v464 = vadd.f32 0.0, %v463
  %v465 = vpop.f32.mrf.mxu0
  %v466 = vadd.f32 0.0, %v465
  %467 = vmatprep.mubr.f32.mxu0 0.0
  %468 = vmatmul.mubr.f32.gmra.mxu0 %v383
  %v469 = vpop.f32.mrf.mxu0
  %v470 = vadd.f32 0.0, %v469
  %v471 = vpop.f32.mrf.mxu0
  %v472 = vadd.f32 0.0, %v471
  %473 = vdwg.mxu0
  %474 = vmatprep.subr.mxu0 0.0
  %475 = vmatpush1.msra.mxu0 0.0
  %476 = vmatprep.subr.mxu0 0.0
  %477 = vmatpush1.msra.mxu0 0.0
  %478 = vmatprep.subr.mxu0 0.0
  %479 = vmatpush1.msra.mxu0 0.0
  %480 = vmatprep.subr.mxu0 0.0
  %481 = vmatpush1.msra.mxu0 0.0
  %482 = vmatprep.subr.mxu0 0.0
  %483 = vmatpush1.msra.mxu0 0.0
  %484 = vmatprep.subr.mxu0 0.0
  %485 = vmatpush1.msra.mxu0 0.0
  %486 = vmatprep.subr.mxu0 0.0
  %487 = vmatpush1.msra.mxu0 0.0
  %488 = vmatprep.subr.mxu0 0.0
  %489 = vmatpush1.msra.mxu0 0.0
  %490 = vmatprep.subr.mxu0 0.0
  %491 = vmatpush1.msra.mxu0 0.0
  %492 = vmatprep.subr.mxu0 0.0
  %493 = vmatpush1.msra.mxu0 0.0
  %494 = vmatprep.subr.mxu0 0.0
  %495 = vmatpush1.msra.mxu0 0.0
  %496 = vmatprep.subr.mxu0 0.0
  %497 = vmatpush1.msra.mxu0 0.0
  %498 = vmatprep.subr.mxu0 %v368
  %499 = vmatpush1.msra.mxu0 %v367
  %500 = vmatprep.subr.mxu0 %v364
  %501 = vmatpush1.msra.mxu0 %v363
  %502 = vmatprep.subr.mxu0 %v360
  %503 = vmatpush1.msra.mxu0 %v359
  %504 = vmatprep.subr.mxu0 %v356
  %505 = vmatpush1.msra.mxu0 %v355
  %506 = vmatprep.subr.mxu0 0.0
  %507 = vmatpush2.msra.mxu0 0.0
  %508 = vmatprep.subr.mxu0 0.0
  %509 = vmatpush2.msra.mxu0 0.0
  %510 = vmatprep.subr.mxu0 0.0
  %511 = vmatpush2.msra.mxu0 0.0
  %512 = vmatprep.subr.mxu0 0.0
  %513 = vmatpush2.msra.mxu0 0.0
  %514 = vmatprep.subr.mxu0 0.0
  %515 = vmatpush2.msra.mxu0 0.0
  %516 = vmatprep.subr.mxu0 0.0
  %517 = vmatpush2.msra.mxu0 0.0
  %518 = vmatprep.subr.mxu0 0.0
  %519 = vmatpush2.msra.mxu0 0.0
  %520 = vmatprep.subr.mxu0 0.0
  %521 = vmatpush2.msra.mxu0 0.0
  %522 = vmatprep.subr.mxu0 0.0
  %523 = vmatpush2.msra.mxu0 0.0
  %524 = vmatprep.subr.mxu0 0.0
  %525 = vmatpush2.msra.mxu0 0.0
  %526 = vmatprep.subr.mxu0 0.0
  %527 = vmatpush2.msra.mxu0 0.0
  %528 = vmatprep.subr.mxu0 0.0
  %529 = vmatpush2.msra.mxu0 0.0
  %530 = vmatprep.subr.mxu0 0.0
  %531 = vmatpush2.msra.mxu0 0.0
  %532 = vmatprep.subr.mxu0 0.0
  %533 = vmatpush2.msra.mxu0 0.0
  %534 = vmatprep.subr.mxu0 0.0
  %535 = vmatpush2.msra.mxu0 0.0
  %536 = vmatprep.subr.mxu0 0.0
  %537 = vmatpush2.msra.mxu0 0.0
  %538 = vmatprep.mubr.f32.mxu0 0.0
  %539 = vmatmul.mubr.f32.gmra.mxu0 %v374
  %v540 = vpop.f32.mrf.mxu0
  %v541 = vadd.f32 0.0, %v540
  %v542 = vpop.f32.mrf.mxu0
  %v543 = vadd.f32 0.0, %v542
  %544 = vmatprep.mubr.f32.mxu0 0.0
  %545 = vmatmul.mubr.f32.gmra.mxu0 %v377
  %v546 = vpop.f32.mrf.mxu0
  %v547 = vadd.f32 0.0, %v546
  %v548 = vpop.f32.mrf.mxu0
  %v549 = vadd.f32 0.0, %v548
  %550 = vmatprep.mubr.f32.mxu0 0.0
  %551 = vmatmul.mubr.f32.gmra.mxu0 %v380
  %v552 = vpop.f32.mrf.mxu0
  %v553 = vadd.f32 0.0, %v552
  %v554 = vpop.f32.mrf.mxu0
  %v555 = vadd.f32 0.0, %v554
  %556 = vmatprep.mubr.f32.mxu0 0.0
  %557 = vmatmul.mubr.f32.gmra.mxu0 %v383
  %v558 = vpop.f32.mrf.mxu0
  %v559 = vadd.f32 0.0, %v558
  %v560 = vpop.f32.mrf.mxu0
  %v561 = vadd.f32 0.0, %v560
  %562 = vdwg.mxu0
  %v564 = vsel %vm68, %v276, 0
  %v567 = vsel %vm68, %v277, 0
  %v570 = vsel %vm68, %v278, 0
  %v573 = vsel %vm68, %v279, 0
  %575 = vmatprep.subr.mxu0 0.0
  %576 = vmatpush1.msra.mxu0 0.0
  %577 = vmatprep.subr.mxu0 0.0
  %578 = vmatpush1.msra.mxu0 0.0
  %579 = vmatprep.subr.mxu0 0.0
  %580 = vmatpush1.msra.mxu0 0.0
  %581 = vmatprep.subr.mxu0 0.0
  %582 = vmatpush1.msra.mxu0 0.0
  %583 = vmatprep.subr.mxu0 0.0
  %584 = vmatpush1.msra.mxu0 0.0
  %585 = vmatprep.subr.mxu0 0.0
  %586 = vmatpush1.msra.mxu0 0.0
  %587 = vmatprep.subr.mxu0 0.0
  %588 = vmatpush1.msra.mxu0 0.0
  %589 = vmatprep.subr.mxu0 0.0
  %590 = vmatpush1.msra.mxu0 0.0
  %591 = vmatprep.subr.mxu0 0.0
  %592 = vmatpush1.msra.mxu0 0.0
  %593 = vmatprep.subr.mxu0 0.0
  %594 = vmatpush1.msra.mxu0 0.0
  %595 = vmatprep.subr.mxu0 0.0
  %596 = vmatpush1.msra.mxu0 0.0
  %597 = vmatprep.subr.mxu0 0.0
  %598 = vmatpush1.msra.mxu0 0.0
  %599 = vmatprep.subr.mxu0 %v272
  %600 = vmatpush1.msra.mxu0 %v271
  %601 = vmatprep.subr.mxu0 %v268
  %602 = vmatpush1.msra.mxu0 %v267
  %603 = vmatprep.subr.mxu0 %v264
  %604 = vmatpush1.msra.mxu0 %v263
  %605 = vmatprep.subr.mxu0 %v260
  %606 = vmatpush1.msra.mxu0 %v259
  %607 = vmatprep.subr.mxu0 0.0
  %608 = vmatpush2.msra.mxu0 0.0
  %609 = vmatprep.subr.mxu0 0.0
  %610 = vmatpush2.msra.mxu0 0.0
  %611 = vmatprep.subr.mxu0 0.0
  %612 = vmatpush2.msra.mxu0 0.0
  %613 = vmatprep.subr.mxu0 0.0
  %614 = vmatpush2.msra.mxu0 0.0
  %615 = vmatprep.subr.mxu0 0.0
  %616 = vmatpush2.msra.mxu0 0.0
  %617 = vmatprep.subr.mxu0 0.0
  %618 = vmatpush2.msra.mxu0 0.0
  %619 = vmatprep.subr.mxu0 0.0
  %620 = vmatpush2.msra.mxu0 0.0
  %621 = vmatprep.subr.mxu0 0.0
  %622 = vmatpush2.msra.mxu0 0.0
  %623 = vmatprep.subr.mxu0 0.0
  %624 = vmatpush2.msra.mxu0 0.0
  %625 = vmatprep.subr.mxu0 0.0
  %626 = vmatpush2.msra.mxu0 0.0
  %627 = vmatprep.subr.mxu0 0.0
  %628 = vmatpush2.msra.mxu0 0.0
  %629 = vmatprep.subr.mxu0 0.0
  %630 = vmatpush2.msra.mxu0 0.0
  %631 = vmatprep.subr.mxu0 0.0
  %632 = vmatpush2.msra.mxu0 0.0
  %633 = vmatprep.subr.mxu0 0.0
  %634 = vmatpush2.msra.mxu0 0.0
  %635 = vmatprep.subr.mxu0 0.0
  %636 = vmatpush2.msra.mxu0 0.0
  %637 = vmatprep.subr.mxu0 0.0
  %638 = vmatpush2.msra.mxu0 0.0
  %639 = vmatprep.mubr.f32.mxu0 0.0
  %640 = vmatmul.mubr.f32.gmra.mxu0 %v564
  %v641 = vpop.f32.mrf.mxu0
  %v642 = vadd.f32 %v452, %v641
  %v643 = vpop.f32.mrf.mxu0
  %v644 = vadd.f32 %v454, %v643
  %645 = vmatprep.mubr.f32.mxu0 0.0
  %646 = vmatmul.mubr.f32.gmra.mxu0 %v567
  %v647 = vpop.f32.mrf.mxu0
  %v648 = vadd.f32 %v458, %v647
  %v649 = vpop.f32.mrf.mxu0
  %v650 = vadd.f32 %v460, %v649
  %651 = vmatprep.mubr.f32.mxu0 0.0
  %652 = vmatmul.mubr.f32.gmra.mxu0 %v570
  %v653 = vpop.f32.mrf.mxu0
  %v654 = vadd.f32 %v464, %v653
  %v655 = vpop.f32.mrf.mxu0
  %v656 = vadd.f32 %v466, %v655
  %657 = vmatprep.mubr.f32.mxu0 0.0
  %658 = vmatmul.mubr.f32.gmra.mxu0 %v573
  %v659 = vpop.f32.mrf.mxu0
  %v660 = vadd.f32 %v470, %v659
  %v661 = vpop.f32.mrf.mxu0
  %v662 = vadd.f32 %v472, %v661
  %663 = vdwg.mxu0
  %664 = vmatprep.subr.mxu0 0.0
  %665 = vmatpush1.msra.mxu0 0.0
  %666 = vmatprep.subr.mxu0 0.0
  %667 = vmatpush1.msra.mxu0 0.0
  %668 = vmatprep.subr.mxu0 0.0
  %669 = vmatpush1.msra.mxu0 0.0
  %670 = vmatprep.subr.mxu0 0.0
  %671 = vmatpush1.msra.mxu0 0.0
  %672 = vmatprep.subr.mxu0 0.0
  %673 = vmatpush1.msra.mxu0 0.0
  %674 = vmatprep.subr.mxu0 0.0
  %675 = vmatpush1.msra.mxu0 0.0
  %676 = vmatprep.subr.mxu0 0.0
  %677 = vmatpush1.msra.mxu0 0.0
  %678 = vmatprep.subr.mxu0 0.0
  %679 = vmatpush1.msra.mxu0 0.0
  %680 = vmatprep.subr.mxu0 0.0
  %681 = vmatpush1.msra.mxu0 0.0
  %682 = vmatprep.subr.mxu0 0.0
  %683 = vmatpush1.msra.mxu0 0.0
  %684 = vmatprep.subr.mxu0 0.0
  %685 = vmatpush1.msra.mxu0 0.0
  %686 = vmatprep.subr.mxu0 0.0
  %687 = vmatpush1.msra.mxu0 0.0
  %688 = vmatprep.subr.mxu0 %v274
  %689 = vmatpush1.msra.mxu0 %v273
  %690 = vmatprep.subr.mxu0 %v270
  %691 = vmatpush1.msra.mxu0 %v269
  %692 = vmatprep.subr.mxu0 %v266
  %693 = vmatpush1.msra.mxu0 %v265
  %694 = vmatprep.subr.mxu0 %v262
  %695 = vmatpush1.msra.mxu0 %v261
  %696 = vmatprep.subr.mxu0 0.0
  %697 = vmatpush2.msra.mxu0 0.0
  %698 = vmatprep.subr.mxu0 0.0
  %699 = vmatpush2.msra.mxu0 0.0
  %700 = vmatprep.subr.mxu0 0.0
  %701 = vmatpush2.msra.mxu0 0.0
  %702 = vmatprep.subr.mxu0 0.0
  %703 = vmatpush2.msra.mxu0 0.0
  %704 = vmatprep.subr.mxu0 0.0
  %705 = vmatpush2.msra.mxu0 0.0
  %706 = vmatprep.subr.mxu0 0.0
  %707 = vmatpush2.msra.mxu0 0.0
  %708 = vmatprep.subr.mxu0 0.0
  %709 = vmatpush2.msra.mxu0 0.0
  %710 = vmatprep.subr.mxu0 0.0
  %711 = vmatpush2.msra.mxu0 0.0
  %712 = vmatprep.subr.mxu0 0.0
  %713 = vmatpush2.msra.mxu0 0.0
  %714 = vmatprep.subr.mxu0 0.0
  %715 = vmatpush2.msra.mxu0 0.0
  %716 = vmatprep.subr.mxu0 0.0
  %717 = vmatpush2.msra.mxu0 0.0
  %718 = vmatprep.subr.mxu0 0.0
  %719 = vmatpush2.msra.mxu0 0.0
  %720 = vmatprep.subr.mxu0 0.0
  %721 = vmatpush2.msra.mxu0 0.0
  %722 = vmatprep.subr.mxu0 0.0
  %723 = vmatpush2.msra.mxu0 0.0
  %724 = vmatprep.subr.mxu0 0.0
  %725 = vmatpush2.msra.mxu0 0.0
  %726 = vmatprep.subr.mxu0 0.0
  %727 = vmatpush2.msra.mxu0 0.0
  %728 = vmatprep.mubr.f32.mxu0 0.0
  %729 = vmatmul.mubr.f32.gmra.mxu0 %v564
  %v730 = vpop.f32.mrf.mxu0
  %v731 = vadd.f32 %v541, %v730
  %v732 = vpop.f32.mrf.mxu0
  %v733 = vadd.f32 %v543, %v732
  %734 = vmatprep.mubr.f32.mxu0 0.0
  %735 = vmatmul.mubr.f32.gmra.mxu0 %v567
  %v736 = vpop.f32.mrf.mxu0
  %v737 = vadd.f32 %v547, %v736
  %v738 = vpop.f32.mrf.mxu0
  %v739 = vadd.f32 %v549, %v738
  %740 = vmatprep.mubr.f32.mxu0 0.0
  %741 = vmatmul.mubr.f32.gmra.mxu0 %v570
  %v742 = vpop.f32.mrf.mxu0
  %v743 = vadd.f32 %v553, %v742
  %v744 = vpop.f32.mrf.mxu0
  %v745 = vadd.f32 %v555, %v744
  %746 = vmatprep.mubr.f32.mxu0 0.0
  %747 = vmatmul.mubr.f32.gmra.mxu0 %v573
  %v748 = vpop.f32.mrf.mxu0
  %v749 = vadd.f32 %v559, %v748
  %v750 = vpop.f32.mrf.mxu0
  %v751 = vadd.f32 %v561, %v750
  %752 = vdwg.mxu0
  %753 = vrot.lane.b32.xlu0 %v259, 16
  %v754 = vpop.permute.xlu0 %753
  %755 = vrot.lane.b32.xlu0 %v263, 16
  %v756 = vpop.permute.xlu0 %755
  %757 = vrot.lane.b32.xlu0 %v267, 16
  %v758 = vpop.permute.xlu0 %757
  %759 = vrot.lane.b32.xlu0 %v271, 16
  %v760 = vpop.permute.xlu0 %759
  %761 = vrot.lane.b32.xlu0 %v260, 16
  %v762 = vpop.permute.xlu0 %761
  %763 = vrot.lane.b32.xlu0 %v264, 16
  %v764 = vpop.permute.xlu0 %763
  %765 = vrot.lane.b32.xlu0 %v268, 16
  %v766 = vpop.permute.xlu0 %765
  %767 = vrot.lane.b32.xlu0 %v272, 16
  %v768 = vpop.permute.xlu0 %767
  %769 = vrot.lane.b32.xlu0 %v261, 16
  %v770 = vpop.permute.xlu0 %769
  %771 = vrot.lane.b32.xlu0 %v265, 16
  %v772 = vpop.permute.xlu0 %771
  %773 = vrot.lane.b32.xlu0 %v269, 16
  %v774 = vpop.permute.xlu0 %773
  %775 = vrot.lane.b32.xlu0 %v273, 16
  %v776 = vpop.permute.xlu0 %775
  %777 = vrot.lane.b32.xlu0 %v262, 16
  %v778 = vpop.permute.xlu0 %777
  %779 = vrot.lane.b32.xlu0 %v266, 16
  %v780 = vpop.permute.xlu0 %779
  %781 = vrot.lane.b32.xlu0 %v270, 16
  %v782 = vpop.permute.xlu0 %781
  %783 = vrot.lane.b32.xlu0 %v274, 16
  %v784 = vpop.permute.xlu0 %783
  %vm785 = vcmp.lt.s32.totalorder %v313, 16
  %v786 = vsel %vm785, %v770, %v778
  %v787 = vsel %vm785, %v772, %v780
  %v788 = vsel %vm785, %v774, %v782
  %v789 = vsel %vm785, %v776, %v784
  %v790 = vsel %vm785, %v762, %v770
  %v791 = vsel %vm785, %v764, %v772
  %v792 = vsel %vm785, %v766, %v774
  %v793 = vsel %vm785, %v768, %v776
  %v794 = vsel %vm785, %v754, %v762
  %v795 = vsel %vm785, %v756, %v764
  %v796 = vsel %vm785, %v758, %v766
  %v797 = vsel %vm785, %v760, %v768
  %v798 = vsel %vm785, %v778, %v754
  %v799 = vsel %vm785, %v780, %v756
  %v800 = vsel %vm785, %v782, %v758
  %v801 = vsel %vm785, %v784, %v760
  %s802 = scalar_lea.vmem %s5, 1
  %v803 = vld [vmem:[%s802] ss:$8 sm:$0xf]
  %v805 = vlaneseq
  %v806 = vshrl.u32 %v805, 7
  %v807 = vsub.s32 0, %v806
  %v808 = vrot.slane %v803, %v807
  %v809 = vlaneseq
  %v810 = vshrl.u32 %v809, 7
  %v811 = vsub.s32 1, %v810
  %v812 = vrot.slane %v803, %v811
  %v813 = vlaneseq
  %v814 = vshrl.u32 %v813, 7
  %v815 = vsub.s32 2, %v814
  %v816 = vrot.slane %v803, %v815
  %v817 = vlaneseq
  %v818 = vshrl.u32 %v817, 7
  %v819 = vsub.s32 3, %v818
  %v820 = vrot.slane %v803, %v819
  %v825 = vmul.f32 %v798, %v808
  %v826 = vmul.f32 %v794, %v812
  %v827 = vmul.f32 %v790, %v816
  %v828 = vmul.f32 %v786, %v820
  %v829 = vmul.f32 %v799, %v808
  %v830 = vmul.f32 %v795, %v812
  %v831 = vmul.f32 %v791, %v816
  %v832 = vmul.f32 %v787, %v820
  %v833 = vmul.f32 %v800, %v808
  %v834 = vmul.f32 %v796, %v812
  %v835 = vmul.f32 %v792, %v816
  %v836 = vmul.f32 %v788, %v820
  %v837 = vmul.f32 %v801, %v808
  %v838 = vmul.f32 %v797, %v812
  %v839 = vmul.f32 %v793, %v816
  %v840 = vmul.f32 %v789, %v820
  %s841 = scalar_lea.vmem %s3, 32
  %v842 = vld [vmem:[%s841] sm:$0xff]
  %v843 = vld [vmem:[%s841 + $0x8] sm:$0xff]
  %v844 = vld [vmem:[%s841 + $0x10] sm:$0xff]
  %v845 = vld [vmem:[%s841 + $0x18] sm:$0xff]
  %v847 = vsel %vm68, %v842, 0
  %v850 = vsel %vm68, %v843, 0
  %v853 = vsel %vm68, %v844, 0
  %v856 = vsel %vm68, %v845, 0
  %858 = vmatprep.subr.mxu0 0.0
  %859 = vmatpush1.msra.mxu0 0.0
  %860 = vmatprep.subr.mxu0 0.0
  %861 = vmatpush1.msra.mxu0 0.0
  %862 = vmatprep.subr.mxu0 0.0
  %863 = vmatpush1.msra.mxu0 0.0
  %864 = vmatprep.subr.mxu0 0.0
  %865 = vmatpush1.msra.mxu0 0.0
  %866 = vmatprep.subr.mxu0 0.0
  %867 = vmatpush1.msra.mxu0 0.0
  %868 = vmatprep.subr.mxu0 0.0
  %869 = vmatpush1.msra.mxu0 0.0
  %870 = vmatprep.subr.mxu0 0.0
  %871 = vmatpush1.msra.mxu0 0.0
  %872 = vmatprep.subr.mxu0 0.0
  %873 = vmatpush1.msra.mxu0 0.0
  %874 = vmatprep.subr.mxu0 0.0
  %875 = vmatpush1.msra.mxu0 0.0
  %876 = vmatprep.subr.mxu0 0.0
  %877 = vmatpush1.msra.mxu0 0.0
  %878 = vmatprep.subr.mxu0 0.0
  %879 = vmatpush1.msra.mxu0 0.0
  %880 = vmatprep.subr.mxu0 0.0
  %881 = vmatpush1.msra.mxu0 0.0
  %882 = vmatprep.subr.mxu0 %v838
  %883 = vmatpush1.msra.mxu0 %v837
  %884 = vmatprep.subr.mxu0 %v834
  %885 = vmatpush1.msra.mxu0 %v833
  %886 = vmatprep.subr.mxu0 %v830
  %887 = vmatpush1.msra.mxu0 %v829
  %888 = vmatprep.subr.mxu0 %v826
  %889 = vmatpush1.msra.mxu0 %v825
  %890 = vmatprep.subr.mxu0 0.0
  %891 = vmatpush2.msra.mxu0 0.0
  %892 = vmatprep.subr.mxu0 0.0
  %893 = vmatpush2.msra.mxu0 0.0
  %894 = vmatprep.subr.mxu0 0.0
  %895 = vmatpush2.msra.mxu0 0.0
  %896 = vmatprep.subr.mxu0 0.0
  %897 = vmatpush2.msra.mxu0 0.0
  %898 = vmatprep.subr.mxu0 0.0
  %899 = vmatpush2.msra.mxu0 0.0
  %900 = vmatprep.subr.mxu0 0.0
  %901 = vmatpush2.msra.mxu0 0.0
  %902 = vmatprep.subr.mxu0 0.0
  %903 = vmatpush2.msra.mxu0 0.0
  %904 = vmatprep.subr.mxu0 0.0
  %905 = vmatpush2.msra.mxu0 0.0
  %906 = vmatprep.subr.mxu0 0.0
  %907 = vmatpush2.msra.mxu0 0.0
  %908 = vmatprep.subr.mxu0 0.0
  %909 = vmatpush2.msra.mxu0 0.0
  %910 = vmatprep.subr.mxu0 0.0
  %911 = vmatpush2.msra.mxu0 0.0
  %912 = vmatprep.subr.mxu0 0.0
  %913 = vmatpush2.msra.mxu0 0.0
  %914 = vmatprep.subr.mxu0 0.0
  %915 = vmatpush2.msra.mxu0 0.0
  %916 = vmatprep.subr.mxu0 0.0
  %917 = vmatpush2.msra.mxu0 0.0
  %918 = vmatprep.subr.mxu0 0.0
  %919 = vmatpush2.msra.mxu0 0.0
  %920 = vmatprep.subr.mxu0 0.0
  %921 = vmatpush2.msra.mxu0 0.0
  %922 = vmatprep.mubr.f32.mxu0 0.0
  %923 = vmatmul.mubr.f32.gmra.mxu0 %v847
  %v924 = vpop.f32.mrf.mxu0
  %v925 = vadd.f32 0.0, %v924
  %v926 = vpop.f32.mrf.mxu0
  %v927 = vadd.f32 0.0, %v926
  %928 = vmatprep.mubr.f32.mxu0 0.0
  %929 = vmatmul.mubr.f32.gmra.mxu0 %v850
  %v930 = vpop.f32.mrf.mxu0
  %v931 = vadd.f32 0.0, %v930
  %v932 = vpop.f32.mrf.mxu0
  %v933 = vadd.f32 0.0, %v932
  %934 = vmatprep.mubr.f32.mxu0 0.0
  %935 = vmatmul.mubr.f32.gmra.mxu0 %v853
  %v936 = vpop.f32.mrf.mxu0
  %v937 = vadd.f32 0.0, %v936
  %v938 = vpop.f32.mrf.mxu0
  %v939 = vadd.f32 0.0, %v938
  %940 = vmatprep.mubr.f32.mxu0 0.0
  %941 = vmatmul.mubr.f32.gmra.mxu0 %v856
  %v942 = vpop.f32.mrf.mxu0
  %v943 = vadd.f32 0.0, %v942
  %v944 = vpop.f32.mrf.mxu0
  %v945 = vadd.f32 0.0, %v944
  %946 = vdwg.mxu0
  %947 = vmatprep.subr.mxu0 0.0
  %948 = vmatpush1.msra.mxu0 0.0
  %949 = vmatprep.subr.mxu0 0.0
  %950 = vmatpush1.msra.mxu0 0.0
  %951 = vmatprep.subr.mxu0 0.0
  %952 = vmatpush1.msra.mxu0 0.0
  %953 = vmatprep.subr.mxu0 0.0
  %954 = vmatpush1.msra.mxu0 0.0
  %955 = vmatprep.subr.mxu0 0.0
  %956 = vmatpush1.msra.mxu0 0.0
  %957 = vmatprep.subr.mxu0 0.0
  %958 = vmatpush1.msra.mxu0 0.0
  %959 = vmatprep.subr.mxu0 0.0
  %960 = vmatpush1.msra.mxu0 0.0
  %961 = vmatprep.subr.mxu0 0.0
  %962 = vmatpush1.msra.mxu0 0.0
  %963 = vmatprep.subr.mxu0 0.0
  %964 = vmatpush1.msra.mxu0 0.0
  %965 = vmatprep.subr.mxu0 0.0
  %966 = vmatpush1.msra.mxu0 0.0
  %967 = vmatprep.subr.mxu0 0.0
  %968 = vmatpush1.msra.mxu0 0.0
  %969 = vmatprep.subr.mxu0 0.0
  %970 = vmatpush1.msra.mxu0 0.0
  %971 = vmatprep.subr.mxu0 %v840
  %972 = vmatpush1.msra.mxu0 %v839
  %973 = vmatprep.subr.mxu0 %v836
  %974 = vmatpush1.msra.mxu0 %v835
  %975 = vmatprep.subr.mxu0 %v832
  %976 = vmatpush1.msra.mxu0 %v831
  %977 = vmatprep.subr.mxu0 %v828
  %978 = vmatpush1.msra.mxu0 %v827
  %979 = vmatprep.subr.mxu0 0.0
  %980 = vmatpush2.msra.mxu0 0.0
  %981 = vmatprep.subr.mxu0 0.0
  %982 = vmatpush2.msra.mxu0 0.0
  %983 = vmatprep.subr.mxu0 0.0
  %984 = vmatpush2.msra.mxu0 0.0
  %985 = vmatprep.subr.mxu0 0.0
  %986 = vmatpush2.msra.mxu0 0.0
  %987 = vmatprep.subr.mxu0 0.0
  %988 = vmatpush2.msra.mxu0 0.0
  %989 = vmatprep.subr.mxu0 0.0
  %990 = vmatpush2.msra.mxu0 0.0
  %991 = vmatprep.subr.mxu0 0.0
  %992 = vmatpush2.msra.mxu0 0.0
  %993 = vmatprep.subr.mxu0 0.0
  %994 = vmatpush2.msra.mxu0 0.0
  %995 = vmatprep.subr.mxu0 0.0
  %996 = vmatpush2.msra.mxu0 0.0
  %997 = vmatprep.subr.mxu0 0.0
  %998 = vmatpush2.msra.mxu0 0.0
  %999 = vmatprep.subr.mxu0 0.0
  %1000 = vmatpush2.msra.mxu0 0.0
  %1001 = vmatprep.subr.mxu0 0.0
  %1002 = vmatpush2.msra.mxu0 0.0
  %1003 = vmatprep.subr.mxu0 0.0
  %1004 = vmatpush2.msra.mxu0 0.0
  %1005 = vmatprep.subr.mxu0 0.0
  %1006 = vmatpush2.msra.mxu0 0.0
  %1007 = vmatprep.subr.mxu0 0.0
  %1008 = vmatpush2.msra.mxu0 0.0
  %1009 = vmatprep.subr.mxu0 0.0
  %1010 = vmatpush2.msra.mxu0 0.0
  %1011 = vmatprep.mubr.f32.mxu0 0.0
  %1012 = vmatmul.mubr.f32.gmra.mxu0 %v847
  %v1013 = vpop.f32.mrf.mxu0
  %v1014 = vadd.f32 0.0, %v1013
  %v1015 = vpop.f32.mrf.mxu0
  %v1016 = vadd.f32 0.0, %v1015
  %1017 = vmatprep.mubr.f32.mxu0 0.0
  %1018 = vmatmul.mubr.f32.gmra.mxu0 %v850
  %v1019 = vpop.f32.mrf.mxu0
  %v1020 = vadd.f32 0.0, %v1019
  %v1021 = vpop.f32.mrf.mxu0
  %v1022 = vadd.f32 0.0, %v1021
  %1023 = vmatprep.mubr.f32.mxu0 0.0
  %1024 = vmatmul.mubr.f32.gmra.mxu0 %v853
  %v1025 = vpop.f32.mrf.mxu0
  %v1026 = vadd.f32 0.0, %v1025
  %v1027 = vpop.f32.mrf.mxu0
  %v1028 = vadd.f32 0.0, %v1027
  %1029 = vmatprep.mubr.f32.mxu0 0.0
  %1030 = vmatmul.mubr.f32.gmra.mxu0 %v856
  %v1031 = vpop.f32.mrf.mxu0
  %v1032 = vadd.f32 0.0, %v1031
  %v1033 = vpop.f32.mrf.mxu0
  %v1034 = vadd.f32 0.0, %v1033
  %1035 = vdwg.mxu0
  %v1036 = vadd.f32 %v642, %v925
  %v1037 = vadd.f32 %v644, %v927
  %v1038 = vadd.f32 %v731, %v1014
  %v1039 = vadd.f32 %v733, %v1016
  %v1040 = vadd.f32 %v648, %v931
  %v1041 = vadd.f32 %v650, %v933
  %v1042 = vadd.f32 %v737, %v1020
  %v1043 = vadd.f32 %v739, %v1022
  %v1044 = vadd.f32 %v654, %v937
  %v1045 = vadd.f32 %v656, %v939
  %v1046 = vadd.f32 %v743, %v1026
  %v1047 = vadd.f32 %v745, %v1028
  %v1048 = vadd.f32 %v660, %v943
  %v1049 = vadd.f32 %v662, %v945
  %v1050 = vadd.f32 %v749, %v1032
  %v1051 = vadd.f32 %v751, %v1034
  %1052 = vrot.lane.b32.xlu0 %v259, 15
  %v1053 = vpop.permute.xlu0 %1052
  %1054 = vrot.lane.b32.xlu0 %v263, 15
  %v1055 = vpop.permute.xlu0 %1054
  %1056 = vrot.lane.b32.xlu0 %v267, 15
  %v1057 = vpop.permute.xlu0 %1056
  %1058 = vrot.lane.b32.xlu0 %v271, 15
  %v1059 = vpop.permute.xlu0 %1058
  %1060 = vrot.lane.b32.xlu0 %v260, 15
  %v1061 = vpop.permute.xlu0 %1060
  %1062 = vrot.lane.b32.xlu0 %v264, 15
  %v1063 = vpop.permute.xlu0 %1062
  %1064 = vrot.lane.b32.xlu0 %v268, 15
  %v1065 = vpop.permute.xlu0 %1064
  %1066 = vrot.lane.b32.xlu0 %v272, 15
  %v1067 = vpop.permute.xlu0 %1066
  %1068 = vrot.lane.b32.xlu0 %v261, 15
  %v1069 = vpop.permute.xlu0 %1068
  %1070 = vrot.lane.b32.xlu0 %v265, 15
  %v1071 = vpop.permute.xlu0 %1070
  %1072 = vrot.lane.b32.xlu0 %v269, 15
  %v1073 = vpop.permute.xlu0 %1072
  %1074 = vrot.lane.b32.xlu0 %v273, 15
  %v1075 = vpop.permute.xlu0 %1074
  %1076 = vrot.lane.b32.xlu0 %v262, 15
  %v1077 = vpop.permute.xlu0 %1076
  %1078 = vrot.lane.b32.xlu0 %v266, 15
  %v1079 = vpop.permute.xlu0 %1078
  %1080 = vrot.lane.b32.xlu0 %v270, 15
  %v1081 = vpop.permute.xlu0 %1080
  %1082 = vrot.lane.b32.xlu0 %v274, 15
  %v1083 = vpop.permute.xlu0 %1082
  %vm1084 = vcmp.lt.s32.totalorder %v313, 15
  %v1085 = vsel %vm1084, %v1069, %v1077
  %v1086 = vsel %vm1084, %v1071, %v1079
  %v1087 = vsel %vm1084, %v1073, %v1081
  %v1088 = vsel %vm1084, %v1075, %v1083
  %v1089 = vsel %vm1084, %v1061, %v1069
  %v1090 = vsel %vm1084, %v1063, %v1071
  %v1091 = vsel %vm1084, %v1065, %v1073
  %v1092 = vsel %vm1084, %v1067, %v1075
  %v1093 = vsel %vm1084, %v1053, %v1061
  %v1094 = vsel %vm1084, %v1055, %v1063
  %v1095 = vsel %vm1084, %v1057, %v1065
  %v1096 = vsel %vm1084, %v1059, %v1067
  %v1097 = vsel %vm1084, %v1077, %v1053
  %v1098 = vsel %vm1084, %v1079, %v1055
  %v1099 = vsel %vm1084, %v1081, %v1057
  %v1100 = vsel %vm1084, %v1083, %v1059
  %s1101 = scalar_lea.vmem %s5, 2
  %v1102 = vld [vmem:[%s1101] ss:$8 sm:$0xf]
  %v1104 = vlaneseq
  %v1105 = vshrl.u32 %v1104, 7
  %v1106 = vsub.s32 0, %v1105
  %v1107 = vrot.slane %v1102, %v1106
  %v1108 = vlaneseq
  %v1109 = vshrl.u32 %v1108, 7
  %v1110 = vsub.s32 1, %v1109
  %v1111 = vrot.slane %v1102, %v1110
  %v1112 = vlaneseq
  %v1113 = vshrl.u32 %v1112, 7
  %v1114 = vsub.s32 2, %v1113
  %v1115 = vrot.slane %v1102, %v1114
  %v1116 = vlaneseq
  %v1117 = vshrl.u32 %v1116, 7
  %v1118 = vsub.s32 3, %v1117
  %v1119 = vrot.slane %v1102, %v1118
  %v1124 = vmul.f32 %v1097, %v1107
  %v1125 = vmul.f32 %v1093, %v1111
  %v1126 = vmul.f32 %v1089, %v1115
  %v1127 = vmul.f32 %v1085, %v1119
  %v1128 = vmul.f32 %v1098, %v1107
  %v1129 = vmul.f32 %v1094, %v1111
  %v1130 = vmul.f32 %v1090, %v1115
  %v1131 = vmul.f32 %v1086, %v1119
  %v1132 = vmul.f32 %v1099, %v1107
  %v1133 = vmul.f32 %v1095, %v1111
  %v1134 = vmul.f32 %v1091, %v1115
  %v1135 = vmul.f32 %v1087, %v1119
  %v1136 = vmul.f32 %v1100, %v1107
  %v1137 = vmul.f32 %v1096, %v1111
  %v1138 = vmul.f32 %v1092, %v1115
  %v1139 = vmul.f32 %v1088, %v1119
  %s1140 = scalar_lea.vmem %s3, 64
  %v1141 = vld [vmem:[%s1140] sm:$0xff]
  %v1142 = vld [vmem:[%s1140 + $0x8] sm:$0xff]
  %v1143 = vld [vmem:[%s1140 + $0x10] sm:$0xff]
  %v1144 = vld [vmem:[%s1140 + $0x18] sm:$0xff]
  %v1146 = vsel %vm68, %v1141, 0
  %v1149 = vsel %vm68, %v1142, 0
  %v1152 = vsel %vm68, %v1143, 0
  %v1155 = vsel %vm68, %v1144, 0
  %1157 = vmatprep.subr.mxu0 0.0
  %1158 = vmatpush1.msra.mxu0 0.0
  %1159 = vmatprep.subr.mxu0 0.0
  %1160 = vmatpush1.msra.mxu0 0.0
  %1161 = vmatprep.subr.mxu0 0.0
  %1162 = vmatpush1.msra.mxu0 0.0
  %1163 = vmatprep.subr.mxu0 0.0
  %1164 = vmatpush1.msra.mxu0 0.0
  %1165 = vmatprep.subr.mxu0 0.0
  %1166 = vmatpush1.msra.mxu0 0.0
  %1167 = vmatprep.subr.mxu0 0.0
  %1168 = vmatpush1.msra.mxu0 0.0
  %1169 = vmatprep.subr.mxu0 0.0
  %1170 = vmatpush1.msra.mxu0 0.0
  %1171 = vmatprep.subr.mxu0 0.0
  %1172 = vmatpush1.msra.mxu0 0.0
  %1173 = vmatprep.subr.mxu0 0.0
  %1174 = vmatpush1.msra.mxu0 0.0
  %1175 = vmatprep.subr.mxu0 0.0
  %1176 = vmatpush1.msra.mxu0 0.0
  %1177 = vmatprep.subr.mxu0 0.0
  %1178 = vmatpush1.msra.mxu0 0.0
  %1179 = vmatprep.subr.mxu0 0.0
  %1180 = vmatpush1.msra.mxu0 0.0
  %1181 = vmatprep.subr.mxu0 %v1137
  %1182 = vmatpush1.msra.mxu0 %v1136
  %1183 = vmatprep.subr.mxu0 %v1133
  %1184 = vmatpush1.msra.mxu0 %v1132
  %1185 = vmatprep.subr.mxu0 %v1129
  %1186 = vmatpush1.msra.mxu0 %v1128
  %1187 = vmatprep.subr.mxu0 %v1125
  %1188 = vmatpush1.msra.mxu0 %v1124
  %1189 = vmatprep.subr.mxu0 0.0
  %1190 = vmatpush2.msra.mxu0 0.0
  %1191 = vmatprep.subr.mxu0 0.0
  %1192 = vmatpush2.msra.mxu0 0.0
  %1193 = vmatprep.subr.mxu0 0.0
  %1194 = vmatpush2.msra.mxu0 0.0
  %1195 = vmatprep.subr.mxu0 0.0
  %1196 = vmatpush2.msra.mxu0 0.0
  %1197 = vmatprep.subr.mxu0 0.0
  %1198 = vmatpush2.msra.mxu0 0.0
  %1199 = vmatprep.subr.mxu0 0.0
  %1200 = vmatpush2.msra.mxu0 0.0
  %1201 = vmatprep.subr.mxu0 0.0
  %1202 = vmatpush2.msra.mxu0 0.0
  %1203 = vmatprep.subr.mxu0 0.0
  %1204 = vmatpush2.msra.mxu0 0.0
  %1205 = vmatprep.subr.mxu0 0.0
  %1206 = vmatpush2.msra.mxu0 0.0
  %1207 = vmatprep.subr.mxu0 0.0
  %1208 = vmatpush2.msra.mxu0 0.0
  %1209 = vmatprep.subr.mxu0 0.0
  %1210 = vmatpush2.msra.mxu0 0.0
  %1211 = vmatprep.subr.mxu0 0.0
  %1212 = vmatpush2.msra.mxu0 0.0
  %1213 = vmatprep.subr.mxu0 0.0
  %1214 = vmatpush2.msra.mxu0 0.0
  %1215 = vmatprep.subr.mxu0 0.0
  %1216 = vmatpush2.msra.mxu0 0.0
  %1217 = vmatprep.subr.mxu0 0.0
  %1218 = vmatpush2.msra.mxu0 0.0
  %1219 = vmatprep.subr.mxu0 0.0
  %1220 = vmatpush2.msra.mxu0 0.0
  %1221 = vmatprep.mubr.f32.mxu0 0.0
  %1222 = vmatmul.mubr.f32.gmra.mxu0 %v1146
  %v1223 = vpop.f32.mrf.mxu0
  %v1224 = vadd.f32 0.0, %v1223
  %v1225 = vpop.f32.mrf.mxu0
  %v1226 = vadd.f32 0.0, %v1225
  %1227 = vmatprep.mubr.f32.mxu0 0.0
  %1228 = vmatmul.mubr.f32.gmra.mxu0 %v1149
  %v1229 = vpop.f32.mrf.mxu0
  %v1230 = vadd.f32 0.0, %v1229
  %v1231 = vpop.f32.mrf.mxu0
  %v1232 = vadd.f32 0.0, %v1231
  %1233 = vmatprep.mubr.f32.mxu0 0.0
  %1234 = vmatmul.mubr.f32.gmra.mxu0 %v1152
  %v1235 = vpop.f32.mrf.mxu0
  %v1236 = vadd.f32 0.0, %v1235
  %v1237 = vpop.f32.mrf.mxu0
  %v1238 = vadd.f32 0.0, %v1237
  %1239 = vmatprep.mubr.f32.mxu0 0.0
  %1240 = vmatmul.mubr.f32.gmra.mxu0 %v1155
  %v1241 = vpop.f32.mrf.mxu0
  %v1242 = vadd.f32 0.0, %v1241
  %v1243 = vpop.f32.mrf.mxu0
  %v1244 = vadd.f32 0.0, %v1243
  %1245 = vdwg.mxu0
  %1246 = vmatprep.subr.mxu0 0.0
  %1247 = vmatpush1.msra.mxu0 0.0
  %1248 = vmatprep.subr.mxu0 0.0
  %1249 = vmatpush1.msra.mxu0 0.0
  %1250 = vmatprep.subr.mxu0 0.0
  %1251 = vmatpush1.msra.mxu0 0.0
  %1252 = vmatprep.subr.mxu0 0.0
  %1253 = vmatpush1.msra.mxu0 0.0
  %1254 = vmatprep.subr.mxu0 0.0
  %1255 = vmatpush1.msra.mxu0 0.0
  %1256 = vmatprep.subr.mxu0 0.0
  %1257 = vmatpush1.msra.mxu0 0.0
  %1258 = vmatprep.subr.mxu0 0.0
  %1259 = vmatpush1.msra.mxu0 0.0
  %1260 = vmatprep.subr.mxu0 0.0
  %1261 = vmatpush1.msra.mxu0 0.0
  %1262 = vmatprep.subr.mxu0 0.0
  %1263 = vmatpush1.msra.mxu0 0.0
  %1264 = vmatprep.subr.mxu0 0.0
  %1265 = vmatpush1.msra.mxu0 0.0
  %1266 = vmatprep.subr.mxu0 0.0
  %1267 = vmatpush1.msra.mxu0 0.0
  %1268 = vmatprep.subr.mxu0 0.0
  %1269 = vmatpush1.msra.mxu0 0.0
  %1270 = vmatprep.subr.mxu0 %v1139
  %1271 = vmatpush1.msra.mxu0 %v1138
  %1272 = vmatprep.subr.mxu0 %v1135
  %1273 = vmatpush1.msra.mxu0 %v1134
  %1274 = vmatprep.subr.mxu0 %v1131
  %1275 = vmatpush1.msra.mxu0 %v1130
  %1276 = vmatprep.subr.mxu0 %v1127
  %1277 = vmatpush1.msra.mxu0 %v1126
  %1278 = vmatprep.subr.mxu0 0.0
  %1279 = vmatpush2.msra.mxu0 0.0
  %1280 = vmatprep.subr.mxu0 0.0
  %1281 = vmatpush2.msra.mxu0 0.0
  %1282 = vmatprep.subr.mxu0 0.0
  %1283 = vmatpush2.msra.mxu0 0.0
  %1284 = vmatprep.subr.mxu0 0.0
  %1285 = vmatpush2.msra.mxu0 0.0
  %1286 = vmatprep.subr.mxu0 0.0
  %1287 = vmatpush2.msra.mxu0 0.0
  %1288 = vmatprep.subr.mxu0 0.0
  %1289 = vmatpush2.msra.mxu0 0.0
  %1290 = vmatprep.subr.mxu0 0.0
  %1291 = vmatpush2.msra.mxu0 0.0
  %1292 = vmatprep.subr.mxu0 0.0
  %1293 = vmatpush2.msra.mxu0 0.0
  %1294 = vmatprep.subr.mxu0 0.0
  %1295 = vmatpush2.msra.mxu0 0.0
  %1296 = vmatprep.subr.mxu0 0.0
  %1297 = vmatpush2.msra.mxu0 0.0
  %1298 = vmatprep.subr.mxu0 0.0
  %1299 = vmatpush2.msra.mxu0 0.0
  %1300 = vmatprep.subr.mxu0 0.0
  %1301 = vmatpush2.msra.mxu0 0.0
  %1302 = vmatprep.subr.mxu0 0.0
  %1303 = vmatpush2.msra.mxu0 0.0
  %1304 = vmatprep.subr.mxu0 0.0
  %1305 = vmatpush2.msra.mxu0 0.0
  %1306 = vmatprep.subr.mxu0 0.0
  %1307 = vmatpush2.msra.mxu0 0.0
  %1308 = vmatprep.subr.mxu0 0.0
  %1309 = vmatpush2.msra.mxu0 0.0
  %1310 = vmatprep.mubr.f32.mxu0 0.0
  %1311 = vmatmul.mubr.f32.gmra.mxu0 %v1146
  %v1312 = vpop.f32.mrf.mxu0
  %v1313 = vadd.f32 0.0, %v1312
  %v1314 = vpop.f32.mrf.mxu0
  %v1315 = vadd.f32 0.0, %v1314
  %1316 = vmatprep.mubr.f32.mxu0 0.0
  %1317 = vmatmul.mubr.f32.gmra.mxu0 %v1149
  %v1318 = vpop.f32.mrf.mxu0
  %v1319 = vadd.f32 0.0, %v1318
  %v1320 = vpop.f32.mrf.mxu0
  %v1321 = vadd.f32 0.0, %v1320
  %1322 = vmatprep.mubr.f32.mxu0 0.0
  %1323 = vmatmul.mubr.f32.gmra.mxu0 %v1152
  %v1324 = vpop.f32.mrf.mxu0
  %v1325 = vadd.f32 0.0, %v1324
  %v1326 = vpop.f32.mrf.mxu0
  %v1327 = vadd.f32 0.0, %v1326
  %1328 = vmatprep.mubr.f32.mxu0 0.0
  %1329 = vmatmul.mubr.f32.gmra.mxu0 %v1155
  %v1330 = vpop.f32.mrf.mxu0
  %v1331 = vadd.f32 0.0, %v1330
  %v1332 = vpop.f32.mrf.mxu0
  %v1333 = vadd.f32 0.0, %v1332
  %1334 = vdwg.mxu0
  %v1335 = vadd.f32 %v1036, %v1224
  %v1336 = vadd.f32 %v1037, %v1226
  %v1337 = vadd.f32 %v1038, %v1313
  %v1338 = vadd.f32 %v1039, %v1315
  %v1339 = vadd.f32 %v1040, %v1230
  %v1340 = vadd.f32 %v1041, %v1232
  %v1341 = vadd.f32 %v1042, %v1319
  %v1342 = vadd.f32 %v1043, %v1321
  %v1343 = vadd.f32 %v1044, %v1236
  %v1344 = vadd.f32 %v1045, %v1238
  %v1345 = vadd.f32 %v1046, %v1325
  %v1346 = vadd.f32 %v1047, %v1327
  %v1347 = vadd.f32 %v1048, %v1242
  %v1348 = vadd.f32 %v1049, %v1244
  %v1349 = vadd.f32 %v1050, %v1331
  %v1350 = vadd.f32 %v1051, %v1333
  %1351 = vrot.lane.b32.xlu0 %v259, 1
  %v1352 = vpop.permute.xlu0 %1351
  %1353 = vrot.lane.b32.xlu0 %v263, 1
  %v1354 = vpop.permute.xlu0 %1353
  %1355 = vrot.lane.b32.xlu0 %v267, 1
  %v1356 = vpop.permute.xlu0 %1355
  %1357 = vrot.lane.b32.xlu0 %v271, 1
  %v1358 = vpop.permute.xlu0 %1357
  %1359 = vrot.lane.b32.xlu0 %v260, 1
  %v1360 = vpop.permute.xlu0 %1359
  %1361 = vrot.lane.b32.xlu0 %v264, 1
  %v1362 = vpop.permute.xlu0 %1361
  %1363 = vrot.lane.b32.xlu0 %v268, 1
  %v1364 = vpop.permute.xlu0 %1363
  %1365 = vrot.lane.b32.xlu0 %v272, 1
  %v1366 = vpop.permute.xlu0 %1365
  %1367 = vrot.lane.b32.xlu0 %v261, 1
  %v1368 = vpop.permute.xlu0 %1367
  %1369 = vrot.lane.b32.xlu0 %v265, 1
  %v1370 = vpop.permute.xlu0 %1369
  %1371 = vrot.lane.b32.xlu0 %v269, 1
  %v1372 = vpop.permute.xlu0 %1371
  %1373 = vrot.lane.b32.xlu0 %v273, 1
  %v1374 = vpop.permute.xlu0 %1373
  %1375 = vrot.lane.b32.xlu0 %v262, 1
  %v1376 = vpop.permute.xlu0 %1375
  %1377 = vrot.lane.b32.xlu0 %v266, 1
  %v1378 = vpop.permute.xlu0 %1377
  %1379 = vrot.lane.b32.xlu0 %v270, 1
  %v1380 = vpop.permute.xlu0 %1379
  %1381 = vrot.lane.b32.xlu0 %v274, 1
  %v1382 = vpop.permute.xlu0 %1381
  %vm1383 = vcmp.lt.s32.totalorder %v313, 1
  %v1384 = vsel %vm1383, %v1368, %v1376
  %v1385 = vsel %vm1383, %v1370, %v1378
  %v1386 = vsel %vm1383, %v1372, %v1380
  %v1387 = vsel %vm1383, %v1374, %v1382
  %v1388 = vsel %vm1383, %v1360, %v1368
  %v1389 = vsel %vm1383, %v1362, %v1370
  %v1390 = vsel %vm1383, %v1364, %v1372
  %v1391 = vsel %vm1383, %v1366, %v1374
  %v1392 = vsel %vm1383, %v1352, %v1360
  %v1393 = vsel %vm1383, %v1354, %v1362
  %v1394 = vsel %vm1383, %v1356, %v1364
  %v1395 = vsel %vm1383, %v1358, %v1366
  %v1396 = vsel %vm1383, %v1376, %v1352
  %v1397 = vsel %vm1383, %v1378, %v1354
  %v1398 = vsel %vm1383, %v1380, %v1356
  %v1399 = vsel %vm1383, %v1382, %v1358
  %s1400 = scalar_lea.vmem %s5, 3
  %v1401 = vld [vmem:[%s1400] ss:$8 sm:$0xf]
  %v1403 = vlaneseq
  %v1404 = vshrl.u32 %v1403, 7
  %v1405 = vsub.s32 0, %v1404
  %v1406 = vrot.slane %v1401, %v1405
  %v1407 = vlaneseq
  %v1408 = vshrl.u32 %v1407, 7
  %v1409 = vsub.s32 1, %v1408
  %v1410 = vrot.slane %v1401, %v1409
  %v1411 = vlaneseq
  %v1412 = vshrl.u32 %v1411, 7
  %v1413 = vsub.s32 2, %v1412
  %v1414 = vrot.slane %v1401, %v1413
  %v1415 = vlaneseq
  %v1416 = vshrl.u32 %v1415, 7
  %v1417 = vsub.s32 3, %v1416
  %v1418 = vrot.slane %v1401, %v1417
  %v1423 = vmul.f32 %v1396, %v1406
  %v1424 = vmul.f32 %v1392, %v1410
  %v1425 = vmul.f32 %v1388, %v1414
  %v1426 = vmul.f32 %v1384, %v1418
  %v1427 = vmul.f32 %v1397, %v1406
  %v1428 = vmul.f32 %v1393, %v1410
  %v1429 = vmul.f32 %v1389, %v1414
  %v1430 = vmul.f32 %v1385, %v1418
  %v1431 = vmul.f32 %v1398, %v1406
  %v1432 = vmul.f32 %v1394, %v1410
  %v1433 = vmul.f32 %v1390, %v1414
  %v1434 = vmul.f32 %v1386, %v1418
  %v1435 = vmul.f32 %v1399, %v1406
  %v1436 = vmul.f32 %v1395, %v1410
  %v1437 = vmul.f32 %v1391, %v1414
  %v1438 = vmul.f32 %v1387, %v1418
  %s1439 = scalar_lea.vmem %s3, 96
  %v1440 = vld [vmem:[%s1439] sm:$0xff]
  %v1441 = vld [vmem:[%s1439 + $0x8] sm:$0xff]
  %v1442 = vld [vmem:[%s1439 + $0x10] sm:$0xff]
  %v1443 = vld [vmem:[%s1439 + $0x18] sm:$0xff]
  %v1445 = vsel %vm68, %v1440, 0
  %v1448 = vsel %vm68, %v1441, 0
  %v1451 = vsel %vm68, %v1442, 0
  %v1454 = vsel %vm68, %v1443, 0
  %1456 = vmatprep.subr.mxu0 0.0
  %1457 = vmatpush1.msra.mxu0 0.0
  %1458 = vmatprep.subr.mxu0 0.0
  %1459 = vmatpush1.msra.mxu0 0.0
  %1460 = vmatprep.subr.mxu0 0.0
  %1461 = vmatpush1.msra.mxu0 0.0
  %1462 = vmatprep.subr.mxu0 0.0
  %1463 = vmatpush1.msra.mxu0 0.0
  %1464 = vmatprep.subr.mxu0 0.0
  %1465 = vmatpush1.msra.mxu0 0.0
  %1466 = vmatprep.subr.mxu0 0.0
  %1467 = vmatpush1.msra.mxu0 0.0
  %1468 = vmatprep.subr.mxu0 0.0
  %1469 = vmatpush1.msra.mxu0 0.0
  %1470 = vmatprep.subr.mxu0 0.0
  %1471 = vmatpush1.msra.mxu0 0.0
  %1472 = vmatprep.subr.mxu0 0.0
  %1473 = vmatpush1.msra.mxu0 0.0
  %1474 = vmatprep.subr.mxu0 0.0
  %1475 = vmatpush1.msra.mxu0 0.0
  %1476 = vmatprep.subr.mxu0 0.0
  %1477 = vmatpush1.msra.mxu0 0.0
  %1478 = vmatprep.subr.mxu0 0.0
  %1479 = vmatpush1.msra.mxu0 0.0
  %1480 = vmatprep.subr.mxu0 %v1436
  %1481 = vmatpush1.msra.mxu0 %v1435
  %1482 = vmatprep.subr.mxu0 %v1432
  %1483 = vmatpush1.msra.mxu0 %v1431
  %1484 = vmatprep.subr.mxu0 %v1428
  %1485 = vmatpush1.msra.mxu0 %v1427
  %1486 = vmatprep.subr.mxu0 %v1424
  %1487 = vmatpush1.msra.mxu0 %v1423
  %1488 = vmatprep.subr.mxu0 0.0
  %1489 = vmatpush2.msra.mxu0 0.0
  %1490 = vmatprep.subr.mxu0 0.0
  %1491 = vmatpush2.msra.mxu0 0.0
  %1492 = vmatprep.subr.mxu0 0.0
  %1493 = vmatpush2.msra.mxu0 0.0
  %1494 = vmatprep.subr.mxu0 0.0
  %1495 = vmatpush2.msra.mxu0 0.0
  %1496 = vmatprep.subr.mxu0 0.0
  %1497 = vmatpush2.msra.mxu0 0.0
  %1498 = vmatprep.subr.mxu0 0.0
  %1499 = vmatpush2.msra.mxu0 0.0
  %1500 = vmatprep.subr.mxu0 0.0
  %1501 = vmatpush2.msra.mxu0 0.0
  %1502 = vmatprep.subr.mxu0 0.0
  %1503 = vmatpush2.msra.mxu0 0.0
  %1504 = vmatprep.subr.mxu0 0.0
  %1505 = vmatpush2.msra.mxu0 0.0
  %1506 = vmatprep.subr.mxu0 0.0
  %1507 = vmatpush2.msra.mxu0 0.0
  %1508 = vmatprep.subr.mxu0 0.0
  %1509 = vmatpush2.msra.mxu0 0.0
  %1510 = vmatprep.subr.mxu0 0.0
  %1511 = vmatpush2.msra.mxu0 0.0
  %1512 = vmatprep.subr.mxu0 0.0
  %1513 = vmatpush2.msra.mxu0 0.0
  %1514 = vmatprep.subr.mxu0 0.0
  %1515 = vmatpush2.msra.mxu0 0.0
  %1516 = vmatprep.subr.mxu0 0.0
  %1517 = vmatpush2.msra.mxu0 0.0
  %1518 = vmatprep.subr.mxu0 0.0
  %1519 = vmatpush2.msra.mxu0 0.0
  %1520 = vmatprep.mubr.f32.mxu0 0.0
  %1521 = vmatmul.mubr.f32.gmra.mxu0 %v1445
  %v1522 = vpop.f32.mrf.mxu0
  %v1523 = vadd.f32 0.0, %v1522
  %v1524 = vpop.f32.mrf.mxu0
  %v1525 = vadd.f32 0.0, %v1524
  %1526 = vmatprep.mubr.f32.mxu0 0.0
  %1527 = vmatmul.mubr.f32.gmra.mxu0 %v1448
  %v1528 = vpop.f32.mrf.mxu0
  %v1529 = vadd.f32 0.0, %v1528
  %v1530 = vpop.f32.mrf.mxu0
  %v1531 = vadd.f32 0.0, %v1530
  %1532 = vmatprep.mubr.f32.mxu0 0.0
  %1533 = vmatmul.mubr.f32.gmra.mxu0 %v1451
  %v1534 = vpop.f32.mrf.mxu0
  %v1535 = vadd.f32 0.0, %v1534
  %v1536 = vpop.f32.mrf.mxu0
  %v1537 = vadd.f32 0.0, %v1536
  %1538 = vmatprep.mubr.f32.mxu0 0.0
  %1539 = vmatmul.mubr.f32.gmra.mxu0 %v1454
  %v1540 = vpop.f32.mrf.mxu0
  %v1541 = vadd.f32 0.0, %v1540
  %v1542 = vpop.f32.mrf.mxu0
  %v1543 = vadd.f32 0.0, %v1542
  %1544 = vdwg.mxu0
  %1545 = vmatprep.subr.mxu0 0.0
  %1546 = vmatpush1.msra.mxu0 0.0
  %1547 = vmatprep.subr.mxu0 0.0
  %1548 = vmatpush1.msra.mxu0 0.0
  %1549 = vmatprep.subr.mxu0 0.0
  %1550 = vmatpush1.msra.mxu0 0.0
  %1551 = vmatprep.subr.mxu0 0.0
  %1552 = vmatpush1.msra.mxu0 0.0
  %1553 = vmatprep.subr.mxu0 0.0
  %1554 = vmatpush1.msra.mxu0 0.0
  %1555 = vmatprep.subr.mxu0 0.0
  %1556 = vmatpush1.msra.mxu0 0.0
  %1557 = vmatprep.subr.mxu0 0.0
  %1558 = vmatpush1.msra.mxu0 0.0
  %1559 = vmatprep.subr.mxu0 0.0
  %1560 = vmatpush1.msra.mxu0 0.0
  %1561 = vmatprep.subr.mxu0 0.0
  %1562 = vmatpush1.msra.mxu0 0.0
  %1563 = vmatprep.subr.mxu0 0.0
  %1564 = vmatpush1.msra.mxu0 0.0
  %1565 = vmatprep.subr.mxu0 0.0
  %1566 = vmatpush1.msra.mxu0 0.0
  %1567 = vmatprep.subr.mxu0 0.0
  %1568 = vmatpush1.msra.mxu0 0.0
  %1569 = vmatprep.subr.mxu0 %v1438
  %1570 = vmatpush1.msra.mxu0 %v1437
  %1571 = vmatprep.subr.mxu0 %v1434
  %1572 = vmatpush1.msra.mxu0 %v1433
  %1573 = vmatprep.subr.mxu0 %v1430
  %1574 = vmatpush1.msra.mxu0 %v1429
  %1575 = vmatprep.subr.mxu0 %v1426
  %1576 = vmatpush1.msra.mxu0 %v1425
  %1577 = vmatprep.subr.mxu0 0.0
  %1578 = vmatpush2.msra.mxu0 0.0
  %1579 = vmatprep.subr.mxu0 0.0
  %1580 = vmatpush2.msra.mxu0 0.0
  %1581 = vmatprep.subr.mxu0 0.0
  %1582 = vmatpush2.msra.mxu0 0.0
  %1583 = vmatprep.subr.mxu0 0.0
  %1584 = vmatpush2.msra.mxu0 0.0
  %1585 = vmatprep.subr.mxu0 0.0
  %1586 = vmatpush2.msra.mxu0 0.0
  %1587 = vmatprep.subr.mxu0 0.0
  %1588 = vmatpush2.msra.mxu0 0.0
  %1589 = vmatprep.subr.mxu0 0.0
  %1590 = vmatpush2.msra.mxu0 0.0
  %1591 = vmatprep.subr.mxu0 0.0
  %1592 = vmatpush2.msra.mxu0 0.0
  %1593 = vmatprep.subr.mxu0 0.0
  %1594 = vmatpush2.msra.mxu0 0.0
  %1595 = vmatprep.subr.mxu0 0.0
  %1596 = vmatpush2.msra.mxu0 0.0
  %1597 = vmatprep.subr.mxu0 0.0
  %1598 = vmatpush2.msra.mxu0 0.0
  %1599 = vmatprep.subr.mxu0 0.0
  %1600 = vmatpush2.msra.mxu0 0.0
  %1601 = vmatprep.subr.mxu0 0.0
  %1602 = vmatpush2.msra.mxu0 0.0
  %1603 = vmatprep.subr.mxu0 0.0
  %1604 = vmatpush2.msra.mxu0 0.0
  %1605 = vmatprep.subr.mxu0 0.0
  %1606 = vmatpush2.msra.mxu0 0.0
  %1607 = vmatprep.subr.mxu0 0.0
  %1608 = vmatpush2.msra.mxu0 0.0
  %1609 = vmatprep.mubr.f32.mxu0 0.0
  %1610 = vmatmul.mubr.f32.gmra.mxu0 %v1445
  %v1611 = vpop.f32.mrf.mxu0
  %v1612 = vadd.f32 0.0, %v1611
  %v1613 = vpop.f32.mrf.mxu0
  %v1614 = vadd.f32 0.0, %v1613
  %1615 = vmatprep.mubr.f32.mxu0 0.0
  %1616 = vmatmul.mubr.f32.gmra.mxu0 %v1448
  %v1617 = vpop.f32.mrf.mxu0
  %v1618 = vadd.f32 0.0, %v1617
  %v1619 = vpop.f32.mrf.mxu0
  %v1620 = vadd.f32 0.0, %v1619
  %1621 = vmatprep.mubr.f32.mxu0 0.0
  %1622 = vmatmul.mubr.f32.gmra.mxu0 %v1451
  %v1623 = vpop.f32.mrf.mxu0
  %v1624 = vadd.f32 0.0, %v1623
  %v1625 = vpop.f32.mrf.mxu0
  %v1626 = vadd.f32 0.0, %v1625
  %1627 = vmatprep.mubr.f32.mxu0 0.0
  %1628 = vmatmul.mubr.f32.gmra.mxu0 %v1454
  %v1629 = vpop.f32.mrf.mxu0
  %v1630 = vadd.f32 0.0, %v1629
  %v1631 = vpop.f32.mrf.mxu0
  %v1632 = vadd.f32 0.0, %v1631
  %1633 = vdwg.mxu0
  %v1634 = vadd.f32 %v1335, %v1523
  %v1635 = vadd.f32 %v1336, %v1525
  %v1636 = vadd.f32 %v1337, %v1612
  %v1637 = vadd.f32 %v1338, %v1614
  %v1638 = vadd.f32 %v1339, %v1529
  %v1639 = vadd.f32 %v1340, %v1531
  %v1640 = vadd.f32 %v1341, %v1618
  %v1641 = vadd.f32 %v1342, %v1620
  %v1642 = vadd.f32 %v1343, %v1535
  %v1643 = vadd.f32 %v1344, %v1537
  %v1644 = vadd.f32 %v1345, %v1624
  %v1645 = vadd.f32 %v1346, %v1626
  %v1646 = vadd.f32 %v1347, %v1541
  %v1647 = vadd.f32 %v1348, %v1543
  %v1648 = vadd.f32 %v1349, %v1630
  %v1649 = vadd.f32 %v1350, %v1632
  %1650 = vrot.lane.b32.xlu0 %v259, 127
  %v1651 = vpop.permute.xlu0 %1650
  %1652 = vrot.lane.b32.xlu0 %v263, 127
  %v1653 = vpop.permute.xlu0 %1652
  %1654 = vrot.lane.b32.xlu0 %v267, 127
  %v1655 = vpop.permute.xlu0 %1654
  %1656 = vrot.lane.b32.xlu0 %v271, 127
  %v1657 = vpop.permute.xlu0 %1656
  %1658 = vrot.lane.b32.xlu0 %v260, 127
  %v1659 = vpop.permute.xlu0 %1658
  %1660 = vrot.lane.b32.xlu0 %v264, 127
  %v1661 = vpop.permute.xlu0 %1660
  %1662 = vrot.lane.b32.xlu0 %v268, 127
  %v1663 = vpop.permute.xlu0 %1662
  %1664 = vrot.lane.b32.xlu0 %v272, 127
  %v1665 = vpop.permute.xlu0 %1664
  %1666 = vrot.lane.b32.xlu0 %v261, 127
  %v1667 = vpop.permute.xlu0 %1666
  %1668 = vrot.lane.b32.xlu0 %v265, 127
  %v1669 = vpop.permute.xlu0 %1668
  %1670 = vrot.lane.b32.xlu0 %v269, 127
  %v1671 = vpop.permute.xlu0 %1670
  %1672 = vrot.lane.b32.xlu0 %v273, 127
  %v1673 = vpop.permute.xlu0 %1672
  %1674 = vrot.lane.b32.xlu0 %v262, 127
  %v1675 = vpop.permute.xlu0 %1674
  %1676 = vrot.lane.b32.xlu0 %v266, 127
  %v1677 = vpop.permute.xlu0 %1676
  %1678 = vrot.lane.b32.xlu0 %v270, 127
  %v1679 = vpop.permute.xlu0 %1678
  %1680 = vrot.lane.b32.xlu0 %v274, 127
  %v1681 = vpop.permute.xlu0 %1680
  %vm1682 = vcmp.lt.s32.totalorder %v313, 127
  %v1683 = vsel %vm1682, %v1667, %v1675
  %v1684 = vsel %vm1682, %v1669, %v1677
  %v1685 = vsel %vm1682, %v1671, %v1679
  %v1686 = vsel %vm1682, %v1673, %v1681
  %v1687 = vsel %vm1682, %v1659, %v1667
  %v1688 = vsel %vm1682, %v1661, %v1669
  %v1689 = vsel %vm1682, %v1663, %v1671
  %v1690 = vsel %vm1682, %v1665, %v1673
  %v1691 = vsel %vm1682, %v1651, %v1659
  %v1692 = vsel %vm1682, %v1653, %v1661
  %v1693 = vsel %vm1682, %v1655, %v1663
  %v1694 = vsel %vm1682, %v1657, %v1665
  %v1695 = vsel %vm1682, %v1675, %v1651
  %v1696 = vsel %vm1682, %v1677, %v1653
  %v1697 = vsel %vm1682, %v1679, %v1655
  %v1698 = vsel %vm1682, %v1681, %v1657
  %s1699 = scalar_lea.vmem %s5, 5
  %v1700 = vld [vmem:[%s1699] ss:$8 sm:$0xf]
  %v1702 = vlaneseq
  %v1703 = vshrl.u32 %v1702, 7
  %v1704 = vsub.s32 0, %v1703
  %v1705 = vrot.slane %v1700, %v1704
  %v1706 = vlaneseq
  %v1707 = vshrl.u32 %v1706, 7
  %v1708 = vsub.s32 1, %v1707
  %v1709 = vrot.slane %v1700, %v1708
  %v1710 = vlaneseq
  %v1711 = vshrl.u32 %v1710, 7
  %v1712 = vsub.s32 2, %v1711
  %v1713 = vrot.slane %v1700, %v1712
  %v1714 = vlaneseq
  %v1715 = vshrl.u32 %v1714, 7
  %v1716 = vsub.s32 3, %v1715
  %v1717 = vrot.slane %v1700, %v1716
  %v1722 = vmul.f32 %v1691, %v1705
  %v1723 = vmul.f32 %v1687, %v1709
  %v1724 = vmul.f32 %v1683, %v1713
  %v1725 = vmul.f32 %v1695, %v1717
  %v1726 = vmul.f32 %v1692, %v1705
  %v1727 = vmul.f32 %v1688, %v1709
  %v1728 = vmul.f32 %v1684, %v1713
  %v1729 = vmul.f32 %v1696, %v1717
  %v1730 = vmul.f32 %v1693, %v1705
  %v1731 = vmul.f32 %v1689, %v1709
  %v1732 = vmul.f32 %v1685, %v1713
  %v1733 = vmul.f32 %v1697, %v1717
  %v1734 = vmul.f32 %v1694, %v1705
  %v1735 = vmul.f32 %v1690, %v1709
  %v1736 = vmul.f32 %v1686, %v1713
  %v1737 = vmul.f32 %v1698, %v1717
  %s1738 = scalar_lea.vmem %s3, 160
  %v1739 = vld [vmem:[%s1738] sm:$0xff]
  %v1740 = vld [vmem:[%s1738 + $0x8] sm:$0xff]
  %v1741 = vld [vmem:[%s1738 + $0x10] sm:$0xff]
  %v1742 = vld [vmem:[%s1738 + $0x18] sm:$0xff]
  %v1744 = vsel %vm68, %v1739, 0
  %v1747 = vsel %vm68, %v1740, 0
  %v1750 = vsel %vm68, %v1741, 0
  %v1753 = vsel %vm68, %v1742, 0
  %1755 = vmatprep.subr.mxu0 0.0
  %1756 = vmatpush1.msra.mxu0 0.0
  %1757 = vmatprep.subr.mxu0 0.0
  %1758 = vmatpush1.msra.mxu0 0.0
  %1759 = vmatprep.subr.mxu0 0.0
  %1760 = vmatpush1.msra.mxu0 0.0
  %1761 = vmatprep.subr.mxu0 0.0
  %1762 = vmatpush1.msra.mxu0 0.0
  %1763 = vmatprep.subr.mxu0 0.0
  %1764 = vmatpush1.msra.mxu0 0.0
  %1765 = vmatprep.subr.mxu0 0.0
  %1766 = vmatpush1.msra.mxu0 0.0
  %1767 = vmatprep.subr.mxu0 0.0
  %1768 = vmatpush1.msra.mxu0 0.0
  %1769 = vmatprep.subr.mxu0 0.0
  %1770 = vmatpush1.msra.mxu0 0.0
  %1771 = vmatprep.subr.mxu0 0.0
  %1772 = vmatpush1.msra.mxu0 0.0
  %1773 = vmatprep.subr.mxu0 0.0
  %1774 = vmatpush1.msra.mxu0 0.0
  %1775 = vmatprep.subr.mxu0 0.0
  %1776 = vmatpush1.msra.mxu0 0.0
  %1777 = vmatprep.subr.mxu0 0.0
  %1778 = vmatpush1.msra.mxu0 0.0
  %1779 = vmatprep.subr.mxu0 %v1735
  %1780 = vmatpush1.msra.mxu0 %v1734
  %1781 = vmatprep.subr.mxu0 %v1731
  %1782 = vmatpush1.msra.mxu0 %v1730
  %1783 = vmatprep.subr.mxu0 %v1727
  %1784 = vmatpush1.msra.mxu0 %v1726
  %1785 = vmatprep.subr.mxu0 %v1723
  %1786 = vmatpush1.msra.mxu0 %v1722
  %1787 = vmatprep.subr.mxu0 0.0
  %1788 = vmatpush2.msra.mxu0 0.0
  %1789 = vmatprep.subr.mxu0 0.0
  %1790 = vmatpush2.msra.mxu0 0.0
  %1791 = vmatprep.subr.mxu0 0.0
  %1792 = vmatpush2.msra.mxu0 0.0
  %1793 = vmatprep.subr.mxu0 0.0
  %1794 = vmatpush2.msra.mxu0 0.0
  %1795 = vmatprep.subr.mxu0 0.0
  %1796 = vmatpush2.msra.mxu0 0.0
  %1797 = vmatprep.subr.mxu0 0.0
  %1798 = vmatpush2.msra.mxu0 0.0
  %1799 = vmatprep.subr.mxu0 0.0
  %1800 = vmatpush2.msra.mxu0 0.0
  %1801 = vmatprep.subr.mxu0 0.0
  %1802 = vmatpush2.msra.mxu0 0.0
  %1803 = vmatprep.subr.mxu0 0.0
  %1804 = vmatpush2.msra.mxu0 0.0
  %1805 = vmatprep.subr.mxu0 0.0
  %1806 = vmatpush2.msra.mxu0 0.0
  %1807 = vmatprep.subr.mxu0 0.0
  %1808 = vmatpush2.msra.mxu0 0.0
  %1809 = vmatprep.subr.mxu0 0.0
  %1810 = vmatpush2.msra.mxu0 0.0
  %1811 = vmatprep.subr.mxu0 0.0
  %1812 = vmatpush2.msra.mxu0 0.0
  %1813 = vmatprep.subr.mxu0 0.0
  %1814 = vmatpush2.msra.mxu0 0.0
  %1815 = vmatprep.subr.mxu0 0.0
  %1816 = vmatpush2.msra.mxu0 0.0
  %1817 = vmatprep.subr.mxu0 0.0
  %1818 = vmatpush2.msra.mxu0 0.0
  %1819 = vmatprep.mubr.f32.mxu0 0.0
  %1820 = vmatmul.mubr.f32.gmra.mxu0 %v1744
  %v1821 = vpop.f32.mrf.mxu0
  %v1822 = vadd.f32 0.0, %v1821
  %v1823 = vpop.f32.mrf.mxu0
  %v1824 = vadd.f32 0.0, %v1823
  %1825 = vmatprep.mubr.f32.mxu0 0.0
  %1826 = vmatmul.mubr.f32.gmra.mxu0 %v1747
  %v1827 = vpop.f32.mrf.mxu0
  %v1828 = vadd.f32 0.0, %v1827
  %v1829 = vpop.f32.mrf.mxu0
  %v1830 = vadd.f32 0.0, %v1829
  %1831 = vmatprep.mubr.f32.mxu0 0.0
  %1832 = vmatmul.mubr.f32.gmra.mxu0 %v1750
  %v1833 = vpop.f32.mrf.mxu0
  %v1834 = vadd.f32 0.0, %v1833
  %v1835 = vpop.f32.mrf.mxu0
  %v1836 = vadd.f32 0.0, %v1835
  %1837 = vmatprep.mubr.f32.mxu0 0.0
  %1838 = vmatmul.mubr.f32.gmra.mxu0 %v1753
  %v1839 = vpop.f32.mrf.mxu0
  %v1840 = vadd.f32 0.0, %v1839
  %v1841 = vpop.f32.mrf.mxu0
  %v1842 = vadd.f32 0.0, %v1841
  %1843 = vdwg.mxu0
  %1844 = vmatprep.subr.mxu0 0.0
  %1845 = vmatpush1.msra.mxu0 0.0
  %1846 = vmatprep.subr.mxu0 0.0
  %1847 = vmatpush1.msra.mxu0 0.0
  %1848 = vmatprep.subr.mxu0 0.0
  %1849 = vmatpush1.msra.mxu0 0.0
  %1850 = vmatprep.subr.mxu0 0.0
  %1851 = vmatpush1.msra.mxu0 0.0
  %1852 = vmatprep.subr.mxu0 0.0
  %1853 = vmatpush1.msra.mxu0 0.0
  %1854 = vmatprep.subr.mxu0 0.0
  %1855 = vmatpush1.msra.mxu0 0.0
  %1856 = vmatprep.subr.mxu0 0.0
  %1857 = vmatpush1.msra.mxu0 0.0
  %1858 = vmatprep.subr.mxu0 0.0
  %1859 = vmatpush1.msra.mxu0 0.0
  %1860 = vmatprep.subr.mxu0 0.0
  %1861 = vmatpush1.msra.mxu0 0.0
  %1862 = vmatprep.subr.mxu0 0.0
  %1863 = vmatpush1.msra.mxu0 0.0
  %1864 = vmatprep.subr.mxu0 0.0
  %1865 = vmatpush1.msra.mxu0 0.0
  %1866 = vmatprep.subr.mxu0 0.0
  %1867 = vmatpush1.msra.mxu0 0.0
  %1868 = vmatprep.subr.mxu0 %v1737
  %1869 = vmatpush1.msra.mxu0 %v1736
  %1870 = vmatprep.subr.mxu0 %v1733
  %1871 = vmatpush1.msra.mxu0 %v1732
  %1872 = vmatprep.subr.mxu0 %v1729
  %1873 = vmatpush1.msra.mxu0 %v1728
  %1874 = vmatprep.subr.mxu0 %v1725
  %1875 = vmatpush1.msra.mxu0 %v1724
  %1876 = vmatprep.subr.mxu0 0.0
  %1877 = vmatpush2.msra.mxu0 0.0
  %1878 = vmatprep.subr.mxu0 0.0
  %1879 = vmatpush2.msra.mxu0 0.0
  %1880 = vmatprep.subr.mxu0 0.0
  %1881 = vmatpush2.msra.mxu0 0.0
  %1882 = vmatprep.subr.mxu0 0.0
  %1883 = vmatpush2.msra.mxu0 0.0
  %1884 = vmatprep.subr.mxu0 0.0
  %1885 = vmatpush2.msra.mxu0 0.0
  %1886 = vmatprep.subr.mxu0 0.0
  %1887 = vmatpush2.msra.mxu0 0.0
  %1888 = vmatprep.subr.mxu0 0.0
  %1889 = vmatpush2.msra.mxu0 0.0
  %1890 = vmatprep.subr.mxu0 0.0
  %1891 = vmatpush2.msra.mxu0 0.0
  %1892 = vmatprep.subr.mxu0 0.0
  %1893 = vmatpush2.msra.mxu0 0.0
  %1894 = vmatprep.subr.mxu0 0.0
  %1895 = vmatpush2.msra.mxu0 0.0
  %1896 = vmatprep.subr.mxu0 0.0
  %1897 = vmatpush2.msra.mxu0 0.0
  %1898 = vmatprep.subr.mxu0 0.0
  %1899 = vmatpush2.msra.mxu0 0.0
  %1900 = vmatprep.subr.mxu0 0.0
  %1901 = vmatpush2.msra.mxu0 0.0
  %1902 = vmatprep.subr.mxu0 0.0
  %1903 = vmatpush2.msra.mxu0 0.0
  %1904 = vmatprep.subr.mxu0 0.0
  %1905 = vmatpush2.msra.mxu0 0.0
  %1906 = vmatprep.subr.mxu0 0.0
  %1907 = vmatpush2.msra.mxu0 0.0
  %1908 = vmatprep.mubr.f32.mxu0 0.0
  %1909 = vmatmul.mubr.f32.gmra.mxu0 %v1744
  %v1910 = vpop.f32.mrf.mxu0
  %v1911 = vadd.f32 0.0, %v1910
  %v1912 = vpop.f32.mrf.mxu0
  %v1913 = vadd.f32 0.0, %v1912
  %1914 = vmatprep.mubr.f32.mxu0 0.0
  %1915 = vmatmul.mubr.f32.gmra.mxu0 %v1747
  %v1916 = vpop.f32.mrf.mxu0
  %v1917 = vadd.f32 0.0, %v1916
  %v1918 = vpop.f32.mrf.mxu0
  %v1919 = vadd.f32 0.0, %v1918
  %1920 = vmatprep.mubr.f32.mxu0 0.0
  %1921 = vmatmul.mubr.f32.gmra.mxu0 %v1750
  %v1922 = vpop.f32.mrf.mxu0
  %v1923 = vadd.f32 0.0, %v1922
  %v1924 = vpop.f32.mrf.mxu0
  %v1925 = vadd.f32 0.0, %v1924
  %1926 = vmatprep.mubr.f32.mxu0 0.0
  %1927 = vmatmul.mubr.f32.gmra.mxu0 %v1753
  %v1928 = vpop.f32.mrf.mxu0
  %v1929 = vadd.f32 0.0, %v1928
  %v1930 = vpop.f32.mrf.mxu0
  %v1931 = vadd.f32 0.0, %v1930
  %1932 = vdwg.mxu0
  %v1933 = vadd.f32 %v1634, %v1822
  %v1934 = vadd.f32 %v1635, %v1824
  %v1935 = vadd.f32 %v1636, %v1911
  %v1936 = vadd.f32 %v1637, %v1913
  %v1937 = vadd.f32 %v1638, %v1828
  %v1938 = vadd.f32 %v1639, %v1830
  %v1939 = vadd.f32 %v1640, %v1917
  %v1940 = vadd.f32 %v1641, %v1919
  %v1941 = vadd.f32 %v1642, %v1834
  %v1942 = vadd.f32 %v1643, %v1836
  %v1943 = vadd.f32 %v1644, %v1923
  %v1944 = vadd.f32 %v1645, %v1925
  %v1945 = vadd.f32 %v1646, %v1840
  %v1946 = vadd.f32 %v1647, %v1842
  %v1947 = vadd.f32 %v1648, %v1929
  %v1948 = vadd.f32 %v1649, %v1931
  %1949 = vrot.lane.b32.xlu0 %v259, 113
  %v1950 = vpop.permute.xlu0 %1949
  %1951 = vrot.lane.b32.xlu0 %v263, 113
  %v1952 = vpop.permute.xlu0 %1951
  %1953 = vrot.lane.b32.xlu0 %v267, 113
  %v1954 = vpop.permute.xlu0 %1953
  %1955 = vrot.lane.b32.xlu0 %v271, 113
  %v1956 = vpop.permute.xlu0 %1955
  %1957 = vrot.lane.b32.xlu0 %v260, 113
  %v1958 = vpop.permute.xlu0 %1957
  %1959 = vrot.lane.b32.xlu0 %v264, 113
  %v1960 = vpop.permute.xlu0 %1959
  %1961 = vrot.lane.b32.xlu0 %v268, 113
  %v1962 = vpop.permute.xlu0 %1961
  %1963 = vrot.lane.b32.xlu0 %v272, 113
  %v1964 = vpop.permute.xlu0 %1963
  %1965 = vrot.lane.b32.xlu0 %v261, 113
  %v1966 = vpop.permute.xlu0 %1965
  %1967 = vrot.lane.b32.xlu0 %v265, 113
  %v1968 = vpop.permute.xlu0 %1967
  %1969 = vrot.lane.b32.xlu0 %v269, 113
  %v1970 = vpop.permute.xlu0 %1969
  %1971 = vrot.lane.b32.xlu0 %v273, 113
  %v1972 = vpop.permute.xlu0 %1971
  %1973 = vrot.lane.b32.xlu0 %v262, 113
  %v1974 = vpop.permute.xlu0 %1973
  %1975 = vrot.lane.b32.xlu0 %v266, 113
  %v1976 = vpop.permute.xlu0 %1975
  %1977 = vrot.lane.b32.xlu0 %v270, 113
  %v1978 = vpop.permute.xlu0 %1977
  %1979 = vrot.lane.b32.xlu0 %v274, 113
  %v1980 = vpop.permute.xlu0 %1979
  %vm1981 = vcmp.lt.s32.totalorder %v313, 113
  %v1982 = vsel %vm1981, %v1966, %v1974
  %v1983 = vsel %vm1981, %v1968, %v1976
  %v1984 = vsel %vm1981, %v1970, %v1978
  %v1985 = vsel %vm1981, %v1972, %v1980
  %v1986 = vsel %vm1981, %v1958, %v1966
  %v1987 = vsel %vm1981, %v1960, %v1968
  %v1988 = vsel %vm1981, %v1962, %v1970
  %v1989 = vsel %vm1981, %v1964, %v1972
  %v1990 = vsel %vm1981, %v1950, %v1958
  %v1991 = vsel %vm1981, %v1952, %v1960
  %v1992 = vsel %vm1981, %v1954, %v1962
  %v1993 = vsel %vm1981, %v1956, %v1964
  %v1994 = vsel %vm1981, %v1974, %v1950
  %v1995 = vsel %vm1981, %v1976, %v1952
  %v1996 = vsel %vm1981, %v1978, %v1954
  %v1997 = vsel %vm1981, %v1980, %v1956
  %s1998 = scalar_lea.vmem %s5, 6
  %v1999 = vld [vmem:[%s1998] ss:$8 sm:$0xf]
  %v2001 = vlaneseq
  %v2002 = vshrl.u32 %v2001, 7
  %v2003 = vsub.s32 0, %v2002
  %v2004 = vrot.slane %v1999, %v2003
  %v2005 = vlaneseq
  %v2006 = vshrl.u32 %v2005, 7
  %v2007 = vsub.s32 1, %v2006
  %v2008 = vrot.slane %v1999, %v2007
  %v2009 = vlaneseq
  %v2010 = vshrl.u32 %v2009, 7
  %v2011 = vsub.s32 2, %v2010
  %v2012 = vrot.slane %v1999, %v2011
  %v2013 = vlaneseq
  %v2014 = vshrl.u32 %v2013, 7
  %v2015 = vsub.s32 3, %v2014
  %v2016 = vrot.slane %v1999, %v2015
  %v2021 = vmul.f32 %v1990, %v2004
  %v2022 = vmul.f32 %v1986, %v2008
  %v2023 = vmul.f32 %v1982, %v2012
  %v2024 = vmul.f32 %v1994, %v2016
  %v2025 = vmul.f32 %v1991, %v2004
  %v2026 = vmul.f32 %v1987, %v2008
  %v2027 = vmul.f32 %v1983, %v2012
  %v2028 = vmul.f32 %v1995, %v2016
  %v2029 = vmul.f32 %v1992, %v2004
  %v2030 = vmul.f32 %v1988, %v2008
  %v2031 = vmul.f32 %v1984, %v2012
  %v2032 = vmul.f32 %v1996, %v2016
  %v2033 = vmul.f32 %v1993, %v2004
  %v2034 = vmul.f32 %v1989, %v2008
  %v2035 = vmul.f32 %v1985, %v2012
  %v2036 = vmul.f32 %v1997, %v2016
  %s2037 = scalar_lea.vmem %s3, 192
  %v2038 = vld [vmem:[%s2037] sm:$0xff]
  %v2039 = vld [vmem:[%s2037 + $0x8] sm:$0xff]
  %v2040 = vld [vmem:[%s2037 + $0x10] sm:$0xff]
  %v2041 = vld [vmem:[%s2037 + $0x18] sm:$0xff]
  %v2043 = vsel %vm68, %v2038, 0
  %v2046 = vsel %vm68, %v2039, 0
  %v2049 = vsel %vm68, %v2040, 0
  %v2052 = vsel %vm68, %v2041, 0
  %2054 = vmatprep.subr.mxu0 0.0
  %2055 = vmatpush1.msra.mxu0 0.0
  %2056 = vmatprep.subr.mxu0 0.0
  %2057 = vmatpush1.msra.mxu0 0.0
  %2058 = vmatprep.subr.mxu0 0.0
  %2059 = vmatpush1.msra.mxu0 0.0
  %2060 = vmatprep.subr.mxu0 0.0
  %2061 = vmatpush1.msra.mxu0 0.0
  %2062 = vmatprep.subr.mxu0 0.0
  %2063 = vmatpush1.msra.mxu0 0.0
  %2064 = vmatprep.subr.mxu0 0.0
  %2065 = vmatpush1.msra.mxu0 0.0
  %2066 = vmatprep.subr.mxu0 0.0
  %2067 = vmatpush1.msra.mxu0 0.0
  %2068 = vmatprep.subr.mxu0 0.0
  %2069 = vmatpush1.msra.mxu0 0.0
  %2070 = vmatprep.subr.mxu0 0.0
  %2071 = vmatpush1.msra.mxu0 0.0
  %2072 = vmatprep.subr.mxu0 0.0
  %2073 = vmatpush1.msra.mxu0 0.0
  %2074 = vmatprep.subr.mxu0 0.0
  %2075 = vmatpush1.msra.mxu0 0.0
  %2076 = vmatprep.subr.mxu0 0.0
  %2077 = vmatpush1.msra.mxu0 0.0
  %2078 = vmatprep.subr.mxu0 %v2034
  %2079 = vmatpush1.msra.mxu0 %v2033
  %2080 = vmatprep.subr.mxu0 %v2030
  %2081 = vmatpush1.msra.mxu0 %v2029
  %2082 = vmatprep.subr.mxu0 %v2026
  %2083 = vmatpush1.msra.mxu0 %v2025
  %2084 = vmatprep.subr.mxu0 %v2022
  %2085 = vmatpush1.msra.mxu0 %v2021
  %2086 = vmatprep.subr.mxu0 0.0
  %2087 = vmatpush2.msra.mxu0 0.0
  %2088 = vmatprep.subr.mxu0 0.0
  %2089 = vmatpush2.msra.mxu0 0.0
  %2090 = vmatprep.subr.mxu0 0.0
  %2091 = vmatpush2.msra.mxu0 0.0
  %2092 = vmatprep.subr.mxu0 0.0
  %2093 = vmatpush2.msra.mxu0 0.0
  %2094 = vmatprep.subr.mxu0 0.0
  %2095 = vmatpush2.msra.mxu0 0.0
  %2096 = vmatprep.subr.mxu0 0.0
  %2097 = vmatpush2.msra.mxu0 0.0
  %2098 = vmatprep.subr.mxu0 0.0
  %2099 = vmatpush2.msra.mxu0 0.0
  %2100 = vmatprep.subr.mxu0 0.0
  %2101 = vmatpush2.msra.mxu0 0.0
  %2102 = vmatprep.subr.mxu0 0.0
  %2103 = vmatpush2.msra.mxu0 0.0
  %2104 = vmatprep.subr.mxu0 0.0
  %2105 = vmatpush2.msra.mxu0 0.0
  %2106 = vmatprep.subr.mxu0 0.0
  %2107 = vmatpush2.msra.mxu0 0.0
  %2108 = vmatprep.subr.mxu0 0.0
  %2109 = vmatpush2.msra.mxu0 0.0
  %2110 = vmatprep.subr.mxu0 0.0
  %2111 = vmatpush2.msra.mxu0 0.0
  %2112 = vmatprep.subr.mxu0 0.0
  %2113 = vmatpush2.msra.mxu0 0.0
  %2114 = vmatprep.subr.mxu0 0.0
  %2115 = vmatpush2.msra.mxu0 0.0
  %2116 = vmatprep.subr.mxu0 0.0
  %2117 = vmatpush2.msra.mxu0 0.0
  %2118 = vmatprep.mubr.f32.mxu0 0.0
  %2119 = vmatmul.mubr.f32.gmra.mxu0 %v2043
  %v2120 = vpop.f32.mrf.mxu0
  %v2121 = vadd.f32 0.0, %v2120
  %v2122 = vpop.f32.mrf.mxu0
  %v2123 = vadd.f32 0.0, %v2122
  %2124 = vmatprep.mubr.f32.mxu0 0.0
  %2125 = vmatmul.mubr.f32.gmra.mxu0 %v2046
  %v2126 = vpop.f32.mrf.mxu0
  %v2127 = vadd.f32 0.0, %v2126
  %v2128 = vpop.f32.mrf.mxu0
  %v2129 = vadd.f32 0.0, %v2128
  %2130 = vmatprep.mubr.f32.mxu0 0.0
  %2131 = vmatmul.mubr.f32.gmra.mxu0 %v2049
  %v2132 = vpop.f32.mrf.mxu0
  %v2133 = vadd.f32 0.0, %v2132
  %v2134 = vpop.f32.mrf.mxu0
  %v2135 = vadd.f32 0.0, %v2134
  %2136 = vmatprep.mubr.f32.mxu0 0.0
  %2137 = vmatmul.mubr.f32.gmra.mxu0 %v2052
  %v2138 = vpop.f32.mrf.mxu0
  %v2139 = vadd.f32 0.0, %v2138
  %v2140 = vpop.f32.mrf.mxu0
  %v2141 = vadd.f32 0.0, %v2140
  %2142 = vdwg.mxu0
  %2143 = vmatprep.subr.mxu0 0.0
  %2144 = vmatpush1.msra.mxu0 0.0
  %2145 = vmatprep.subr.mxu0 0.0
  %2146 = vmatpush1.msra.mxu0 0.0
  %2147 = vmatprep.subr.mxu0 0.0
  %2148 = vmatpush1.msra.mxu0 0.0
  %2149 = vmatprep.subr.mxu0 0.0
  %2150 = vmatpush1.msra.mxu0 0.0
  %2151 = vmatprep.subr.mxu0 0.0
  %2152 = vmatpush1.msra.mxu0 0.0
  %2153 = vmatprep.subr.mxu0 0.0
  %2154 = vmatpush1.msra.mxu0 0.0
  %2155 = vmatprep.subr.mxu0 0.0
  %2156 = vmatpush1.msra.mxu0 0.0
  %2157 = vmatprep.subr.mxu0 0.0
  %2158 = vmatpush1.msra.mxu0 0.0
  %2159 = vmatprep.subr.mxu0 0.0
  %2160 = vmatpush1.msra.mxu0 0.0
  %2161 = vmatprep.subr.mxu0 0.0
  %2162 = vmatpush1.msra.mxu0 0.0
  %2163 = vmatprep.subr.mxu0 0.0
  %2164 = vmatpush1.msra.mxu0 0.0
  %2165 = vmatprep.subr.mxu0 0.0
  %2166 = vmatpush1.msra.mxu0 0.0
  %2167 = vmatprep.subr.mxu0 %v2036
  %2168 = vmatpush1.msra.mxu0 %v2035
  %2169 = vmatprep.subr.mxu0 %v2032
  %2170 = vmatpush1.msra.mxu0 %v2031
  %2171 = vmatprep.subr.mxu0 %v2028
  %2172 = vmatpush1.msra.mxu0 %v2027
  %2173 = vmatprep.subr.mxu0 %v2024
  %2174 = vmatpush1.msra.mxu0 %v2023
  %2175 = vmatprep.subr.mxu0 0.0
  %2176 = vmatpush2.msra.mxu0 0.0
  %2177 = vmatprep.subr.mxu0 0.0
  %2178 = vmatpush2.msra.mxu0 0.0
  %2179 = vmatprep.subr.mxu0 0.0
  %2180 = vmatpush2.msra.mxu0 0.0
  %2181 = vmatprep.subr.mxu0 0.0
  %2182 = vmatpush2.msra.mxu0 0.0
  %2183 = vmatprep.subr.mxu0 0.0
  %2184 = vmatpush2.msra.mxu0 0.0
  %2185 = vmatprep.subr.mxu0 0.0
  %2186 = vmatpush2.msra.mxu0 0.0
  %2187 = vmatprep.subr.mxu0 0.0
  %2188 = vmatpush2.msra.mxu0 0.0
  %2189 = vmatprep.subr.mxu0 0.0
  %2190 = vmatpush2.msra.mxu0 0.0
  %2191 = vmatprep.subr.mxu0 0.0
  %2192 = vmatpush2.msra.mxu0 0.0
  %2193 = vmatprep.subr.mxu0 0.0
  %2194 = vmatpush2.msra.mxu0 0.0
  %2195 = vmatprep.subr.mxu0 0.0
  %2196 = vmatpush2.msra.mxu0 0.0
  %2197 = vmatprep.subr.mxu0 0.0
  %2198 = vmatpush2.msra.mxu0 0.0
  %2199 = vmatprep.subr.mxu0 0.0
  %2200 = vmatpush2.msra.mxu0 0.0
  %2201 = vmatprep.subr.mxu0 0.0
  %2202 = vmatpush2.msra.mxu0 0.0
  %2203 = vmatprep.subr.mxu0 0.0
  %2204 = vmatpush2.msra.mxu0 0.0
  %2205 = vmatprep.subr.mxu0 0.0
  %2206 = vmatpush2.msra.mxu0 0.0
  %2207 = vmatprep.mubr.f32.mxu0 0.0
  %2208 = vmatmul.mubr.f32.gmra.mxu0 %v2043
  %v2209 = vpop.f32.mrf.mxu0
  %v2210 = vadd.f32 0.0, %v2209
  %v2211 = vpop.f32.mrf.mxu0
  %v2212 = vadd.f32 0.0, %v2211
  %2213 = vmatprep.mubr.f32.mxu0 0.0
  %2214 = vmatmul.mubr.f32.gmra.mxu0 %v2046
  %v2215 = vpop.f32.mrf.mxu0
  %v2216 = vadd.f32 0.0, %v2215
  %v2217 = vpop.f32.mrf.mxu0
  %v2218 = vadd.f32 0.0, %v2217
  %2219 = vmatprep.mubr.f32.mxu0 0.0
  %2220 = vmatmul.mubr.f32.gmra.mxu0 %v2049
  %v2221 = vpop.f32.mrf.mxu0
  %v2222 = vadd.f32 0.0, %v2221
  %v2223 = vpop.f32.mrf.mxu0
  %v2224 = vadd.f32 0.0, %v2223
  %2225 = vmatprep.mubr.f32.mxu0 0.0
  %2226 = vmatmul.mubr.f32.gmra.mxu0 %v2052
  %v2227 = vpop.f32.mrf.mxu0
  %v2228 = vadd.f32 0.0, %v2227
  %v2229 = vpop.f32.mrf.mxu0
  %v2230 = vadd.f32 0.0, %v2229
  %2231 = vdwg.mxu0
  %v2232 = vadd.f32 %v1933, %v2121
  %v2233 = vadd.f32 %v1934, %v2123
  %v2234 = vadd.f32 %v1935, %v2210
  %v2235 = vadd.f32 %v1936, %v2212
  %v2236 = vadd.f32 %v1937, %v2127
  %v2237 = vadd.f32 %v1938, %v2129
  %v2238 = vadd.f32 %v1939, %v2216
  %v2239 = vadd.f32 %v1940, %v2218
  %v2240 = vadd.f32 %v1941, %v2133
  %v2241 = vadd.f32 %v1942, %v2135
  %v2242 = vadd.f32 %v1943, %v2222
  %v2243 = vadd.f32 %v1944, %v2224
  %v2244 = vadd.f32 %v1945, %v2139
  %v2245 = vadd.f32 %v1946, %v2141
  %v2246 = vadd.f32 %v1947, %v2228
  %v2247 = vadd.f32 %v1948, %v2230
  %2248 = vrot.lane.b32.xlu0 %v259, 112
  %v2249 = vpop.permute.xlu0 %2248
  %2250 = vrot.lane.b32.xlu0 %v263, 112
  %v2251 = vpop.permute.xlu0 %2250
  %2252 = vrot.lane.b32.xlu0 %v267, 112
  %v2253 = vpop.permute.xlu0 %2252
  %2254 = vrot.lane.b32.xlu0 %v271, 112
  %v2255 = vpop.permute.xlu0 %2254
  %2256 = vrot.lane.b32.xlu0 %v260, 112
  %v2257 = vpop.permute.xlu0 %2256
  %2258 = vrot.lane.b32.xlu0 %v264, 112
  %v2259 = vpop.permute.xlu0 %2258
  %2260 = vrot.lane.b32.xlu0 %v268, 112
  %v2261 = vpop.permute.xlu0 %2260
  %2262 = vrot.lane.b32.xlu0 %v272, 112
  %v2263 = vpop.permute.xlu0 %2262
  %2264 = vrot.lane.b32.xlu0 %v261, 112
  %v2265 = vpop.permute.xlu0 %2264
  %2266 = vrot.lane.b32.xlu0 %v265, 112
  %v2267 = vpop.permute.xlu0 %2266
  %2268 = vrot.lane.b32.xlu0 %v269, 112
  %v2269 = vpop.permute.xlu0 %2268
  %2270 = vrot.lane.b32.xlu0 %v273, 112
  %v2271 = vpop.permute.xlu0 %2270
  %2272 = vrot.lane.b32.xlu0 %v262, 112
  %v2273 = vpop.permute.xlu0 %2272
  %2274 = vrot.lane.b32.xlu0 %v266, 112
  %v2275 = vpop.permute.xlu0 %2274
  %2276 = vrot.lane.b32.xlu0 %v270, 112
  %v2277 = vpop.permute.xlu0 %2276
  %2278 = vrot.lane.b32.xlu0 %v274, 112
  %v2279 = vpop.permute.xlu0 %2278
  %vm2280 = vcmp.lt.s32.totalorder %v313, 112
  %v2281 = vsel %vm2280, %v2265, %v2273
  %v2282 = vsel %vm2280, %v2267, %v2275
  %v2283 = vsel %vm2280, %v2269, %v2277
  %v2284 = vsel %vm2280, %v2271, %v2279
  %v2285 = vsel %vm2280, %v2257, %v2265
  %v2286 = vsel %vm2280, %v2259, %v2267
  %v2287 = vsel %vm2280, %v2261, %v2269
  %v2288 = vsel %vm2280, %v2263, %v2271
  %v2289 = vsel %vm2280, %v2249, %v2257
  %v2290 = vsel %vm2280, %v2251, %v2259
  %v2291 = vsel %vm2280, %v2253, %v2261
  %v2292 = vsel %vm2280, %v2255, %v2263
  %v2293 = vsel %vm2280, %v2273, %v2249
  %v2294 = vsel %vm2280, %v2275, %v2251
  %v2295 = vsel %vm2280, %v2277, %v2253
  %v2296 = vsel %vm2280, %v2279, %v2255
  %s2297 = scalar_lea.vmem %s5, 7
  %v2298 = vld [vmem:[%s2297] ss:$8 sm:$0xf]
  %v2300 = vlaneseq
  %v2301 = vshrl.u32 %v2300, 7
  %v2302 = vsub.s32 0, %v2301
  %v2303 = vrot.slane %v2298, %v2302
  %v2304 = vlaneseq
  %v2305 = vshrl.u32 %v2304, 7
  %v2306 = vsub.s32 1, %v2305
  %v2307 = vrot.slane %v2298, %v2306
  %v2308 = vlaneseq
  %v2309 = vshrl.u32 %v2308, 7
  %v2310 = vsub.s32 2, %v2309
  %v2311 = vrot.slane %v2298, %v2310
  %v2312 = vlaneseq
  %v2313 = vshrl.u32 %v2312, 7
  %v2314 = vsub.s32 3, %v2313
  %v2315 = vrot.slane %v2298, %v2314
  %v2320 = vmul.f32 %v2289, %v2303
  %v2321 = vmul.f32 %v2285, %v2307
  %v2322 = vmul.f32 %v2281, %v2311
  %v2323 = vmul.f32 %v2293, %v2315
  %v2324 = vmul.f32 %v2290, %v2303
  %v2325 = vmul.f32 %v2286, %v2307
  %v2326 = vmul.f32 %v2282, %v2311
  %v2327 = vmul.f32 %v2294, %v2315
  %v2328 = vmul.f32 %v2291, %v2303
  %v2329 = vmul.f32 %v2287, %v2307
  %v2330 = vmul.f32 %v2283, %v2311
  %v2331 = vmul.f32 %v2295, %v2315
  %v2332 = vmul.f32 %v2292, %v2303
  %v2333 = vmul.f32 %v2288, %v2307
  %v2334 = vmul.f32 %v2284, %v2311
  %v2335 = vmul.f32 %v2296, %v2315
  %s2336 = scalar_lea.vmem %s3, 224
  %v2337 = vld [vmem:[%s2336] sm:$0xff]
  %v2338 = vld [vmem:[%s2336 + $0x8] sm:$0xff]
  %v2339 = vld [vmem:[%s2336 + $0x10] sm:$0xff]
  %v2340 = vld [vmem:[%s2336 + $0x18] sm:$0xff]
  %v2342 = vsel %vm68, %v2337, 0
  %v2345 = vsel %vm68, %v2338, 0
  %v2348 = vsel %vm68, %v2339, 0
  %v2351 = vsel %vm68, %v2340, 0
  %2353 = vmatprep.subr.mxu0 0.0
  %2354 = vmatpush1.msra.mxu0 0.0
  %2355 = vmatprep.subr.mxu0 0.0
  %2356 = vmatpush1.msra.mxu0 0.0
  %2357 = vmatprep.subr.mxu0 0.0
  %2358 = vmatpush1.msra.mxu0 0.0
  %2359 = vmatprep.subr.mxu0 0.0
  %2360 = vmatpush1.msra.mxu0 0.0
  %2361 = vmatprep.subr.mxu0 0.0
  %2362 = vmatpush1.msra.mxu0 0.0
  %2363 = vmatprep.subr.mxu0 0.0
  %2364 = vmatpush1.msra.mxu0 0.0
  %2365 = vmatprep.subr.mxu0 0.0
  %2366 = vmatpush1.msra.mxu0 0.0
  %2367 = vmatprep.subr.mxu0 0.0
  %2368 = vmatpush1.msra.mxu0 0.0
  %2369 = vmatprep.subr.mxu0 0.0
  %2370 = vmatpush1.msra.mxu0 0.0
  %2371 = vmatprep.subr.mxu0 0.0
  %2372 = vmatpush1.msra.mxu0 0.0
  %2373 = vmatprep.subr.mxu0 0.0
  %2374 = vmatpush1.msra.mxu0 0.0
  %2375 = vmatprep.subr.mxu0 0.0
  %2376 = vmatpush1.msra.mxu0 0.0
  %2377 = vmatprep.subr.mxu0 %v2333
  %2378 = vmatpush1.msra.mxu0 %v2332
  %2379 = vmatprep.subr.mxu0 %v2329
  %2380 = vmatpush1.msra.mxu0 %v2328
  %2381 = vmatprep.subr.mxu0 %v2325
  %2382 = vmatpush1.msra.mxu0 %v2324
  %2383 = vmatprep.subr.mxu0 %v2321
  %2384 = vmatpush1.msra.mxu0 %v2320
  %2385 = vmatprep.subr.mxu0 0.0
  %2386 = vmatpush2.msra.mxu0 0.0
  %2387 = vmatprep.subr.mxu0 0.0
  %2388 = vmatpush2.msra.mxu0 0.0
  %2389 = vmatprep.subr.mxu0 0.0
  %2390 = vmatpush2.msra.mxu0 0.0
  %2391 = vmatprep.subr.mxu0 0.0
  %2392 = vmatpush2.msra.mxu0 0.0
  %2393 = vmatprep.subr.mxu0 0.0
  %2394 = vmatpush2.msra.mxu0 0.0
  %2395 = vmatprep.subr.mxu0 0.0
  %2396 = vmatpush2.msra.mxu0 0.0
  %2397 = vmatprep.subr.mxu0 0.0
  %2398 = vmatpush2.msra.mxu0 0.0
  %2399 = vmatprep.subr.mxu0 0.0
  %2400 = vmatpush2.msra.mxu0 0.0
  %2401 = vmatprep.subr.mxu0 0.0
  %2402 = vmatpush2.msra.mxu0 0.0
  %2403 = vmatprep.subr.mxu0 0.0
  %2404 = vmatpush2.msra.mxu0 0.0
  %2405 = vmatprep.subr.mxu0 0.0
  %2406 = vmatpush2.msra.mxu0 0.0
  %2407 = vmatprep.subr.mxu0 0.0
  %2408 = vmatpush2.msra.mxu0 0.0
  %2409 = vmatprep.subr.mxu0 0.0
  %2410 = vmatpush2.msra.mxu0 0.0
  %2411 = vmatprep.subr.mxu0 0.0
  %2412 = vmatpush2.msra.mxu0 0.0
  %2413 = vmatprep.subr.mxu0 0.0
  %2414 = vmatpush2.msra.mxu0 0.0
  %2415 = vmatprep.subr.mxu0 0.0
  %2416 = vmatpush2.msra.mxu0 0.0
  %2417 = vmatprep.mubr.f32.mxu0 0.0
  %2418 = vmatmul.mubr.f32.gmra.mxu0 %v2342
  %v2419 = vpop.f32.mrf.mxu0
  %v2420 = vadd.f32 0.0, %v2419
  %v2421 = vpop.f32.mrf.mxu0
  %v2422 = vadd.f32 0.0, %v2421
  %2423 = vmatprep.mubr.f32.mxu0 0.0
  %2424 = vmatmul.mubr.f32.gmra.mxu0 %v2345
  %v2425 = vpop.f32.mrf.mxu0
  %v2426 = vadd.f32 0.0, %v2425
  %v2427 = vpop.f32.mrf.mxu0
  %v2428 = vadd.f32 0.0, %v2427
  %2429 = vmatprep.mubr.f32.mxu0 0.0
  %2430 = vmatmul.mubr.f32.gmra.mxu0 %v2348
  %v2431 = vpop.f32.mrf.mxu0
  %v2432 = vadd.f32 0.0, %v2431
  %v2433 = vpop.f32.mrf.mxu0
  %v2434 = vadd.f32 0.0, %v2433
  %2435 = vmatprep.mubr.f32.mxu0 0.0
  %2436 = vmatmul.mubr.f32.gmra.mxu0 %v2351
  %v2437 = vpop.f32.mrf.mxu0
  %v2438 = vadd.f32 0.0, %v2437
  %v2439 = vpop.f32.mrf.mxu0
  %v2440 = vadd.f32 0.0, %v2439
  %2441 = vdwg.mxu0
  %2442 = vmatprep.subr.mxu0 0.0
  %2443 = vmatpush1.msra.mxu0 0.0
  %2444 = vmatprep.subr.mxu0 0.0
  %2445 = vmatpush1.msra.mxu0 0.0
  %2446 = vmatprep.subr.mxu0 0.0
  %2447 = vmatpush1.msra.mxu0 0.0
  %2448 = vmatprep.subr.mxu0 0.0
  %2449 = vmatpush1.msra.mxu0 0.0
  %2450 = vmatprep.subr.mxu0 0.0
  %2451 = vmatpush1.msra.mxu0 0.0
  %2452 = vmatprep.subr.mxu0 0.0
  %2453 = vmatpush1.msra.mxu0 0.0
  %2454 = vmatprep.subr.mxu0 0.0
  %2455 = vmatpush1.msra.mxu0 0.0
  %2456 = vmatprep.subr.mxu0 0.0
  %2457 = vmatpush1.msra.mxu0 0.0
  %2458 = vmatprep.subr.mxu0 0.0
  %2459 = vmatpush1.msra.mxu0 0.0
  %2460 = vmatprep.subr.mxu0 0.0
  %2461 = vmatpush1.msra.mxu0 0.0
  %2462 = vmatprep.subr.mxu0 0.0
  %2463 = vmatpush1.msra.mxu0 0.0
  %2464 = vmatprep.subr.mxu0 0.0
  %2465 = vmatpush1.msra.mxu0 0.0
  %2466 = vmatprep.subr.mxu0 %v2335
  %2467 = vmatpush1.msra.mxu0 %v2334
  %2468 = vmatprep.subr.mxu0 %v2331
  %2469 = vmatpush1.msra.mxu0 %v2330
  %2470 = vmatprep.subr.mxu0 %v2327
  %2471 = vmatpush1.msra.mxu0 %v2326
  %2472 = vmatprep.subr.mxu0 %v2323
  %2473 = vmatpush1.msra.mxu0 %v2322
  %2474 = vmatprep.subr.mxu0 0.0
  %2475 = vmatpush2.msra.mxu0 0.0
  %2476 = vmatprep.subr.mxu0 0.0
  %2477 = vmatpush2.msra.mxu0 0.0
  %2478 = vmatprep.subr.mxu0 0.0
  %2479 = vmatpush2.msra.mxu0 0.0
  %2480 = vmatprep.subr.mxu0 0.0
  %2481 = vmatpush2.msra.mxu0 0.0
  %2482 = vmatprep.subr.mxu0 0.0
  %2483 = vmatpush2.msra.mxu0 0.0
  %2484 = vmatprep.subr.mxu0 0.0
  %2485 = vmatpush2.msra.mxu0 0.0
  %2486 = vmatprep.subr.mxu0 0.0
  %2487 = vmatpush2.msra.mxu0 0.0
  %2488 = vmatprep.subr.mxu0 0.0
  %2489 = vmatpush2.msra.mxu0 0.0
  %2490 = vmatprep.subr.mxu0 0.0
  %2491 = vmatpush2.msra.mxu0 0.0
  %2492 = vmatprep.subr.mxu0 0.0
  %2493 = vmatpush2.msra.mxu0 0.0
  %2494 = vmatprep.subr.mxu0 0.0
  %2495 = vmatpush2.msra.mxu0 0.0
  %2496 = vmatprep.subr.mxu0 0.0
  %2497 = vmatpush2.msra.mxu0 0.0
  %2498 = vmatprep.subr.mxu0 0.0
  %2499 = vmatpush2.msra.mxu0 0.0
  %2500 = vmatprep.subr.mxu0 0.0
  %2501 = vmatpush2.msra.mxu0 0.0
  %2502 = vmatprep.subr.mxu0 0.0
  %2503 = vmatpush2.msra.mxu0 0.0
  %2504 = vmatprep.subr.mxu0 0.0
  %2505 = vmatpush2.msra.mxu0 0.0
  %2506 = vmatprep.mubr.f32.mxu0 0.0
  %2507 = vmatmul.mubr.f32.gmra.mxu0 %v2342
  %v2508 = vpop.f32.mrf.mxu0
  %v2509 = vadd.f32 0.0, %v2508
  %v2510 = vpop.f32.mrf.mxu0
  %v2511 = vadd.f32 0.0, %v2510
  %2512 = vmatprep.mubr.f32.mxu0 0.0
  %2513 = vmatmul.mubr.f32.gmra.mxu0 %v2345
  %v2514 = vpop.f32.mrf.mxu0
  %v2515 = vadd.f32 0.0, %v2514
  %v2516 = vpop.f32.mrf.mxu0
  %v2517 = vadd.f32 0.0, %v2516
  %2518 = vmatprep.mubr.f32.mxu0 0.0
  %2519 = vmatmul.mubr.f32.gmra.mxu0 %v2348
  %v2520 = vpop.f32.mrf.mxu0
  %v2521 = vadd.f32 0.0, %v2520
  %v2522 = vpop.f32.mrf.mxu0
  %v2523 = vadd.f32 0.0, %v2522
  %2524 = vmatprep.mubr.f32.mxu0 0.0
  %2525 = vmatmul.mubr.f32.gmra.mxu0 %v2351
  %v2526 = vpop.f32.mrf.mxu0
  %v2527 = vadd.f32 0.0, %v2526
  %v2528 = vpop.f32.mrf.mxu0
  %v2529 = vadd.f32 0.0, %v2528
  %2530 = vdwg.mxu0
  %v2531 = vadd.f32 %v2232, %v2420
  %v2532 = vadd.f32 %v2233, %v2422
  %v2533 = vadd.f32 %v2234, %v2509
  %v2534 = vadd.f32 %v2235, %v2511
  %v2535 = vadd.f32 %v2236, %v2426
  %v2536 = vadd.f32 %v2237, %v2428
  %v2537 = vadd.f32 %v2238, %v2515
  %v2538 = vadd.f32 %v2239, %v2517
  %v2539 = vadd.f32 %v2240, %v2432
  %v2540 = vadd.f32 %v2241, %v2434
  %v2541 = vadd.f32 %v2242, %v2521
  %v2542 = vadd.f32 %v2243, %v2523
  %v2543 = vadd.f32 %v2244, %v2438
  %v2544 = vadd.f32 %v2245, %v2440
  %v2545 = vadd.f32 %v2246, %v2527
  %v2546 = vadd.f32 %v2247, %v2529
  %2547 = vrot.lane.b32.xlu0 %v259, 111
  %v2548 = vpop.permute.xlu0 %2547
  %2549 = vrot.lane.b32.xlu0 %v263, 111
  %v2550 = vpop.permute.xlu0 %2549
  %2551 = vrot.lane.b32.xlu0 %v267, 111
  %v2552 = vpop.permute.xlu0 %2551
  %2553 = vrot.lane.b32.xlu0 %v271, 111
  %v2554 = vpop.permute.xlu0 %2553
  %2555 = vrot.lane.b32.xlu0 %v260, 111
  %v2556 = vpop.permute.xlu0 %2555
  %2557 = vrot.lane.b32.xlu0 %v264, 111
  %v2558 = vpop.permute.xlu0 %2557
  %2559 = vrot.lane.b32.xlu0 %v268, 111
  %v2560 = vpop.permute.xlu0 %2559
  %2561 = vrot.lane.b32.xlu0 %v272, 111
  %v2562 = vpop.permute.xlu0 %2561
  %2563 = vrot.lane.b32.xlu0 %v261, 111
  %v2564 = vpop.permute.xlu0 %2563
  %2565 = vrot.lane.b32.xlu0 %v265, 111
  %v2566 = vpop.permute.xlu0 %2565
  %2567 = vrot.lane.b32.xlu0 %v269, 111
  %v2568 = vpop.permute.xlu0 %2567
  %2569 = vrot.lane.b32.xlu0 %v273, 111
  %v2570 = vpop.permute.xlu0 %2569
  %2571 = vrot.lane.b32.xlu0 %v262, 111
  %v2572 = vpop.permute.xlu0 %2571
  %2573 = vrot.lane.b32.xlu0 %v266, 111
  %v2574 = vpop.permute.xlu0 %2573
  %2575 = vrot.lane.b32.xlu0 %v270, 111
  %v2576 = vpop.permute.xlu0 %2575
  %2577 = vrot.lane.b32.xlu0 %v274, 111
  %v2578 = vpop.permute.xlu0 %2577
  %vm2579 = vcmp.lt.s32.totalorder %v313, 111
  %v2580 = vsel %vm2579, %v2564, %v2572
  %v2581 = vsel %vm2579, %v2566, %v2574
  %v2582 = vsel %vm2579, %v2568, %v2576
  %v2583 = vsel %vm2579, %v2570, %v2578
  %v2584 = vsel %vm2579, %v2556, %v2564
  %v2585 = vsel %vm2579, %v2558, %v2566
  %v2586 = vsel %vm2579, %v2560, %v2568
  %v2587 = vsel %vm2579, %v2562, %v2570
  %v2588 = vsel %vm2579, %v2548, %v2556
  %v2589 = vsel %vm2579, %v2550, %v2558
  %v2590 = vsel %vm2579, %v2552, %v2560
  %v2591 = vsel %vm2579, %v2554, %v2562
  %v2592 = vsel %vm2579, %v2572, %v2548
  %v2593 = vsel %vm2579, %v2574, %v2550
  %v2594 = vsel %vm2579, %v2576, %v2552
  %v2595 = vsel %vm2579, %v2578, %v2554
  %s2596 = scalar_lea.vmem %s5, 32
  %v2597 = vld [vmem:[%s2596] ss:$8 sm:$0xf]
  %v2599 = vlaneseq
  %v2600 = vshrl.u32 %v2599, 7
  %v2601 = vsub.s32 0, %v2600
  %v2602 = vrot.slane %v2597, %v2601
  %v2603 = vlaneseq
  %v2604 = vshrl.u32 %v2603, 7
  %v2605 = vsub.s32 1, %v2604
  %v2606 = vrot.slane %v2597, %v2605
  %v2607 = vlaneseq
  %v2608 = vshrl.u32 %v2607, 7
  %v2609 = vsub.s32 2, %v2608
  %v2610 = vrot.slane %v2597, %v2609
  %v2611 = vlaneseq
  %v2612 = vshrl.u32 %v2611, 7
  %v2613 = vsub.s32 3, %v2612
  %v2614 = vrot.slane %v2597, %v2613
  %v2619 = vmul.f32 %v2588, %v2602
  %v2620 = vmul.f32 %v2584, %v2606
  %v2621 = vmul.f32 %v2580, %v2610
  %v2622 = vmul.f32 %v2592, %v2614
  %v2623 = vmul.f32 %v2589, %v2602
  %v2624 = vmul.f32 %v2585, %v2606
  %v2625 = vmul.f32 %v2581, %v2610
  %v2626 = vmul.f32 %v2593, %v2614
  %v2627 = vmul.f32 %v2590, %v2602
  %v2628 = vmul.f32 %v2586, %v2606
  %v2629 = vmul.f32 %v2582, %v2610
  %v2630 = vmul.f32 %v2594, %v2614
  %v2631 = vmul.f32 %v2591, %v2602
  %v2632 = vmul.f32 %v2587, %v2606
  %v2633 = vmul.f32 %v2583, %v2610
  %v2634 = vmul.f32 %v2595, %v2614
  %s2635 = scalar_lea.vmem %s3, 256
  %v2636 = vld [vmem:[%s2635] sm:$0xff]
  %v2637 = vld [vmem:[%s2635 + $0x8] sm:$0xff]
  %v2638 = vld [vmem:[%s2635 + $0x10] sm:$0xff]
  %v2639 = vld [vmem:[%s2635 + $0x18] sm:$0xff]
  %v2641 = vsel %vm68, %v2636, 0
  %v2644 = vsel %vm68, %v2637, 0
  %v2647 = vsel %vm68, %v2638, 0
  %v2650 = vsel %vm68, %v2639, 0
  %2652 = vmatprep.subr.mxu0 0.0
  %2653 = vmatpush1.msra.mxu0 0.0
  %2654 = vmatprep.subr.mxu0 0.0
  %2655 = vmatpush1.msra.mxu0 0.0
  %2656 = vmatprep.subr.mxu0 0.0
  %2657 = vmatpush1.msra.mxu0 0.0
  %2658 = vmatprep.subr.mxu0 0.0
  %2659 = vmatpush1.msra.mxu0 0.0
  %2660 = vmatprep.subr.mxu0 0.0
  %2661 = vmatpush1.msra.mxu0 0.0
  %2662 = vmatprep.subr.mxu0 0.0
  %2663 = vmatpush1.msra.mxu0 0.0
  %2664 = vmatprep.subr.mxu0 0.0
  %2665 = vmatpush1.msra.mxu0 0.0
  %2666 = vmatprep.subr.mxu0 0.0
  %2667 = vmatpush1.msra.mxu0 0.0
  %2668 = vmatprep.subr.mxu0 0.0
  %2669 = vmatpush1.msra.mxu0 0.0
  %2670 = vmatprep.subr.mxu0 0.0
  %2671 = vmatpush1.msra.mxu0 0.0
  %2672 = vmatprep.subr.mxu0 0.0
  %2673 = vmatpush1.msra.mxu0 0.0
  %2674 = vmatprep.subr.mxu0 0.0
  %2675 = vmatpush1.msra.mxu0 0.0
  %2676 = vmatprep.subr.mxu0 %v2632
  %2677 = vmatpush1.msra.mxu0 %v2631
  %2678 = vmatprep.subr.mxu0 %v2628
  %2679 = vmatpush1.msra.mxu0 %v2627
  %2680 = vmatprep.subr.mxu0 %v2624
  %2681 = vmatpush1.msra.mxu0 %v2623
  %2682 = vmatprep.subr.mxu0 %v2620
  %2683 = vmatpush1.msra.mxu0 %v2619
  %2684 = vmatprep.subr.mxu0 0.0
  %2685 = vmatpush2.msra.mxu0 0.0
  %2686 = vmatprep.subr.mxu0 0.0
  %2687 = vmatpush2.msra.mxu0 0.0
  %2688 = vmatprep.subr.mxu0 0.0
  %2689 = vmatpush2.msra.mxu0 0.0
  %2690 = vmatprep.subr.mxu0 0.0
  %2691 = vmatpush2.msra.mxu0 0.0
  %2692 = vmatprep.subr.mxu0 0.0
  %2693 = vmatpush2.msra.mxu0 0.0
  %2694 = vmatprep.subr.mxu0 0.0
  %2695 = vmatpush2.msra.mxu0 0.0
  %2696 = vmatprep.subr.mxu0 0.0
  %2697 = vmatpush2.msra.mxu0 0.0
  %2698 = vmatprep.subr.mxu0 0.0
  %2699 = vmatpush2.msra.mxu0 0.0
  %2700 = vmatprep.subr.mxu0 0.0
  %2701 = vmatpush2.msra.mxu0 0.0
  %2702 = vmatprep.subr.mxu0 0.0
  %2703 = vmatpush2.msra.mxu0 0.0
  %2704 = vmatprep.subr.mxu0 0.0
  %2705 = vmatpush2.msra.mxu0 0.0
  %2706 = vmatprep.subr.mxu0 0.0
  %2707 = vmatpush2.msra.mxu0 0.0
  %2708 = vmatprep.subr.mxu0 0.0
  %2709 = vmatpush2.msra.mxu0 0.0
  %2710 = vmatprep.subr.mxu0 0.0
  %2711 = vmatpush2.msra.mxu0 0.0
  %2712 = vmatprep.subr.mxu0 0.0
  %2713 = vmatpush2.msra.mxu0 0.0
  %2714 = vmatprep.subr.mxu0 0.0
  %2715 = vmatpush2.msra.mxu0 0.0
  %2716 = vmatprep.mubr.f32.mxu0 0.0
  %2717 = vmatmul.mubr.f32.gmra.mxu0 %v2641
  %v2718 = vpop.f32.mrf.mxu0
  %v2719 = vadd.f32 0.0, %v2718
  %v2720 = vpop.f32.mrf.mxu0
  %v2721 = vadd.f32 0.0, %v2720
  %2722 = vmatprep.mubr.f32.mxu0 0.0
  %2723 = vmatmul.mubr.f32.gmra.mxu0 %v2644
  %v2724 = vpop.f32.mrf.mxu0
  %v2725 = vadd.f32 0.0, %v2724
  %v2726 = vpop.f32.mrf.mxu0
  %v2727 = vadd.f32 0.0, %v2726
  %2728 = vmatprep.mubr.f32.mxu0 0.0
  %2729 = vmatmul.mubr.f32.gmra.mxu0 %v2647
  %v2730 = vpop.f32.mrf.mxu0
  %v2731 = vadd.f32 0.0, %v2730
  %v2732 = vpop.f32.mrf.mxu0
  %v2733 = vadd.f32 0.0, %v2732
  %2734 = vmatprep.mubr.f32.mxu0 0.0
  %2735 = vmatmul.mubr.f32.gmra.mxu0 %v2650
  %v2736 = vpop.f32.mrf.mxu0
  %v2737 = vadd.f32 0.0, %v2736
  %v2738 = vpop.f32.mrf.mxu0
  %v2739 = vadd.f32 0.0, %v2738
  %2740 = vdwg.mxu0
  %2741 = vmatprep.subr.mxu0 0.0
  %2742 = vmatpush1.msra.mxu0 0.0
  %2743 = vmatprep.subr.mxu0 0.0
  %2744 = vmatpush1.msra.mxu0 0.0
  %2745 = vmatprep.subr.mxu0 0.0
  %2746 = vmatpush1.msra.mxu0 0.0
  %2747 = vmatprep.subr.mxu0 0.0
  %2748 = vmatpush1.msra.mxu0 0.0
  %2749 = vmatprep.subr.mxu0 0.0
  %2750 = vmatpush1.msra.mxu0 0.0
  %2751 = vmatprep.subr.mxu0 0.0
  %2752 = vmatpush1.msra.mxu0 0.0
  %2753 = vmatprep.subr.mxu0 0.0
  %2754 = vmatpush1.msra.mxu0 0.0
  %2755 = vmatprep.subr.mxu0 0.0
  %2756 = vmatpush1.msra.mxu0 0.0
  %2757 = vmatprep.subr.mxu0 0.0
  %2758 = vmatpush1.msra.mxu0 0.0
  %2759 = vmatprep.subr.mxu0 0.0
  %2760 = vmatpush1.msra.mxu0 0.0
  %2761 = vmatprep.subr.mxu0 0.0
  %2762 = vmatpush1.msra.mxu0 0.0
  %2763 = vmatprep.subr.mxu0 0.0
  %2764 = vmatpush1.msra.mxu0 0.0
  %2765 = vmatprep.subr.mxu0 %v2634
  %2766 = vmatpush1.msra.mxu0 %v2633
  %2767 = vmatprep.subr.mxu0 %v2630
  %2768 = vmatpush1.msra.mxu0 %v2629
  %2769 = vmatprep.subr.mxu0 %v2626
  %2770 = vmatpush1.msra.mxu0 %v2625
  %2771 = vmatprep.subr.mxu0 %v2622
  %2772 = vmatpush1.msra.mxu0 %v2621
  %2773 = vmatprep.subr.mxu0 0.0
  %2774 = vmatpush2.msra.mxu0 0.0
  %2775 = vmatprep.subr.mxu0 0.0
  %2776 = vmatpush2.msra.mxu0 0.0
  %2777 = vmatprep.subr.mxu0 0.0
  %2778 = vmatpush2.msra.mxu0 0.0
  %2779 = vmatprep.subr.mxu0 0.0
  %2780 = vmatpush2.msra.mxu0 0.0
  %2781 = vmatprep.subr.mxu0 0.0
  %2782 = vmatpush2.msra.mxu0 0.0
  %2783 = vmatprep.subr.mxu0 0.0
  %2784 = vmatpush2.msra.mxu0 0.0
  %2785 = vmatprep.subr.mxu0 0.0
  %2786 = vmatpush2.msra.mxu0 0.0
  %2787 = vmatprep.subr.mxu0 0.0
  %2788 = vmatpush2.msra.mxu0 0.0
  %2789 = vmatprep.subr.mxu0 0.0
  %2790 = vmatpush2.msra.mxu0 0.0
  %2791 = vmatprep.subr.mxu0 0.0
  %2792 = vmatpush2.msra.mxu0 0.0
  %2793 = vmatprep.subr.mxu0 0.0
  %2794 = vmatpush2.msra.mxu0 0.0
  %2795 = vmatprep.subr.mxu0 0.0
  %2796 = vmatpush2.msra.mxu0 0.0
  %2797 = vmatprep.subr.mxu0 0.0
  %2798 = vmatpush2.msra.mxu0 0.0
  %2799 = vmatprep.subr.mxu0 0.0
  %2800 = vmatpush2.msra.mxu0 0.0
  %2801 = vmatprep.subr.mxu0 0.0
  %2802 = vmatpush2.msra.mxu0 0.0
  %2803 = vmatprep.subr.mxu0 0.0
  %2804 = vmatpush2.msra.mxu0 0.0
  %2805 = vmatprep.mubr.f32.mxu0 0.0
  %2806 = vmatmul.mubr.f32.gmra.mxu0 %v2641
  %v2807 = vpop.f32.mrf.mxu0
  %v2808 = vadd.f32 0.0, %v2807
  %v2809 = vpop.f32.mrf.mxu0
  %v2810 = vadd.f32 0.0, %v2809
  %2811 = vmatprep.mubr.f32.mxu0 0.0
  %2812 = vmatmul.mubr.f32.gmra.mxu0 %v2644
  %v2813 = vpop.f32.mrf.mxu0
  %v2814 = vadd.f32 0.0, %v2813
  %v2815 = vpop.f32.mrf.mxu0
  %v2816 = vadd.f32 0.0, %v2815
  %2817 = vmatprep.mubr.f32.mxu0 0.0
  %2818 = vmatmul.mubr.f32.gmra.mxu0 %v2647
  %v2819 = vpop.f32.mrf.mxu0
  %v2820 = vadd.f32 0.0, %v2819
  %v2821 = vpop.f32.mrf.mxu0
  %v2822 = vadd.f32 0.0, %v2821
  %2823 = vmatprep.mubr.f32.mxu0 0.0
  %2824 = vmatmul.mubr.f32.gmra.mxu0 %v2650
  %v2825 = vpop.f32.mrf.mxu0
  %v2826 = vadd.f32 0.0, %v2825
  %v2827 = vpop.f32.mrf.mxu0
  %v2828 = vadd.f32 0.0, %v2827
  %2829 = vdwg.mxu0
  %v2830 = vadd.f32 %v2531, %v2719
  %v2831 = vadd.f32 %v2532, %v2721
  %v2832 = vadd.f32 %v2533, %v2808
  %v2833 = vadd.f32 %v2534, %v2810
  %v2834 = vadd.f32 %v2535, %v2725
  %v2835 = vadd.f32 %v2536, %v2727
  %v2836 = vadd.f32 %v2537, %v2814
  %v2837 = vadd.f32 %v2538, %v2816
  %v2838 = vadd.f32 %v2539, %v2731
  %v2839 = vadd.f32 %v2540, %v2733
  %v2840 = vadd.f32 %v2541, %v2820
  %v2841 = vadd.f32 %v2542, %v2822
  %v2842 = vadd.f32 %v2543, %v2737
  %v2843 = vadd.f32 %v2544, %v2739
  %v2844 = vadd.f32 %v2545, %v2826
  %v2845 = vadd.f32 %v2546, %v2828
  %v2846 = vld [vmem:[%s4] sm:$0xff]
  %v2847 = vld [vmem:[%s4 + $0x8] sm:$0xff]
  %v2848 = vld [vmem:[%s4 + $0x10] sm:$0xff]
  %v2849 = vld [vmem:[%s4 + $0x18] sm:$0xff]
  %2851 = vset.pattern.permute.xlu0 0
  %2852 = vperm.xlu0 %2851, %v2846
  %v2853 = vpop.permute.xlu0 %2852
  %2856 = vset.pattern.permute.xlu0 0
  %2857 = vperm.xlu0 %2856, %v2847
  %v2858 = vpop.permute.xlu0 %2857
  %2861 = vset.pattern.permute.xlu0 0
  %2862 = vperm.xlu0 %2861, %v2848
  %v2863 = vpop.permute.xlu0 %2862
  %2866 = vset.pattern.permute.xlu0 0
  %2867 = vperm.xlu0 %2866, %v2849
  %v2868 = vpop.permute.xlu0 %2867
  %v2870 = vadd.f32 %v2830, %v2853
  %v2871 = vadd.f32 %v2831, %v2853
  %v2872 = vadd.f32 %v2832, %v2853
  %v2873 = vadd.f32 %v2833, %v2853
  %v2874 = vadd.f32 %v2834, %v2858
  %v2875 = vadd.f32 %v2835, %v2858
  %v2876 = vadd.f32 %v2836, %v2858
  %v2877 = vadd.f32 %v2837, %v2858
  %v2878 = vadd.f32 %v2838, %v2863
  %v2879 = vadd.f32 %v2839, %v2863
  %v2880 = vadd.f32 %v2840, %v2863
  %v2881 = vadd.f32 %v2841, %v2863
  %v2882 = vadd.f32 %v2842, %v2868
  %v2883 = vadd.f32 %v2843, %v2868
  %v2884 = vadd.f32 %v2844, %v2868
  %v2885 = vadd.f32 %v2845, %v2868
  %v2886 = vmax.f32 %v2870, 0.0
  %v2887 = vmax.f32 %v2871, 0.0
  %v2888 = vmax.f32 %v2872, 0.0
  %v2889 = vmax.f32 %v2873, 0.0
  %v2890 = vmax.f32 %v2874, 0.0
  %v2891 = vmax.f32 %v2875, 0.0
  %v2892 = vmax.f32 %v2876, 0.0
  %v2893 = vmax.f32 %v2877, 0.0
  %v2894 = vmax.f32 %v2878, 0.0
  %v2895 = vmax.f32 %v2879, 0.0
  %v2896 = vmax.f32 %v2880, 0.0
  %v2897 = vmax.f32 %v2881, 0.0
  %v2898 = vmax.f32 %v2882, 0.0
  %v2899 = vmax.f32 %v2883, 0.0
  %v2900 = vmax.f32 %v2884, 0.0
  %v2901 = vmax.f32 %v2885, 0.0
  %2902 = vst [vmem:[%s6] sm:$0xff] %v2886
  %2903 = vst [vmem:[%s6 + $0x8] sm:$0xff] %v2887
  %2904 = vst [vmem:[%s6 + $0x10] sm:$0xff] %v2890
  %2905 = vst [vmem:[%s6 + $0x18] sm:$0xff] %v2891
  %2906 = vst [vmem:[%s6 + $0x20] sm:$0xff] %v2894
  %2907 = vst [vmem:[%s6 + $0x28] sm:$0xff] %v2895
  %2908 = vst [vmem:[%s6 + $0x30] sm:$0xff] %v2898
  %2909 = vst [vmem:[%s6 + $0x38] sm:$0xff] %v2899
  %s2910 = scalar_lea.vmem %s6, 64
  %2911 = vst [vmem:[%s2910] sm:$0xff] %v2888
  %2912 = vst [vmem:[%s2910 + $0x8] sm:$0xff] %v2889
  %2913 = vst [vmem:[%s2910 + $0x10] sm:$0xff] %v2892
  %2914 = vst [vmem:[%s2910 + $0x18] sm:$0xff] %v2893
  %2915 = vst [vmem:[%s2910 + $0x20] sm:$0xff] %v2896
  %2916 = vst [vmem:[%s2910 + $0x28] sm:$0xff] %v2897
  %2917 = vst [vmem:[%s2910 + $0x30] sm:$0xff] %v2900
  %2918 = vst [vmem:[%s2910 + $0x38] sm:$0xff] %v2901
  // Predicated region
  $region26: #{head_forward.1} parent=0 // pred_check
    _
  $region27: #{head_forward.1} parent=0 // pred_check_branch
    %2920 = sbr.rel (0) target = $region29
  $region28: #{head_forward.1} parent=0 // pred_region
    _
  $region29: #{head_forward.1} parent=0 // pred_fallthru
    _
  // Predicated region
  $region30: #{head_forward.1} parent=0 // pred_check
    _
  $region31: #{head_forward.1} parent=0 // pred_check_branch
    %2922 = sbr.rel (0) target = $region33
  $region32: #{head_forward.1} parent=0 // pred_region
    _
  $region33: #{head_forward.1} parent=0 // pred_fallthru
    _

</llo_original>
